<compile_context>
chip_gen: v7x
topology: tpu7x:2x2x1
jax: 0.10.0
libtpu: 0.0.40
codegen_flags: <defaults>
</compile_context>

<pallas_src>
import functools

import jax
import jax.numpy as jnp
from jax.experimental import pallas as pl
from jax.experimental.pallas import tpu as pltpu


def _round_up(x, m):
    return ((x + m - 1) // m) * m


def _tpu_vmem_capacity_bytes():
    try:
        return int(pltpu.get_tpu_info().vmem_capacity_bytes)
    except Exception:           # unknown API / non-TPU tracing: assume 128 MiB class
        return 128 << 20


def _choose_pool_tiles(B, S, D, itemsize):
    """Generation-aware tile sizes for the streaming pooling kernel."""
    vmem_cap = _tpu_vmem_capacity_bytes()
    if vmem_cap <= (64 << 20):            # v7x-class: 64 MiB VMEM, ~3.2 TB/s HBM
        tile_target, vmem_cap_limit = 12 << 20, 48 << 20
    else:                                  # v5e / v6e: 128 MiB VMEM
        tile_target, vmem_cap_limit = 6 << 20, 100 << 20

    # D (feature) axis: lane-aligned chunks that divide D; >=2 chunks feeds the
    # second TensorCore on v7x and bounds the per-step footprint everywhere.
    if D % 128 != 0 or D <= 256:
        tile_d = D
    else:
        tile_d = D
        for cand in (512, 256, 128):
            if D % cand == 0 and D // cand >= 2:
                tile_d = cand
                break

    # S (streaming) axis: full S if it fits the byte target, else a multiple of
    # 128 (keeps the 2-D mask block lane-legal); the remainder tile is masked
    # in-kernel.
    if S <= 128 or B * S * tile_d * itemsize <= tile_target:
        tile_s = S
    else:
        rows = tile_target // max(1, B * tile_d * itemsize)
        rows = max(128, (rows // 128) * 128)
        tile_s = min(rows, (S // 128) * 128)
    return tile_d, tile_s, vmem_cap_limit


def _choose_head_tile_k(D):
    """Contraction-axis tile for the heads kernel (streams the fused W1)."""
    if D <= 1024 or D % 128 != 0:
        return D
    for cand in (512, 256, 128):
        if D % cand == 0:
            return cand
    return D


# ---------------------------------------------------------------------------
# Kernel (a): streaming masked-sum pooling   num[b, d] = sum_s h[b,s,d]*m[b,s]
# ---------------------------------------------------------------------------
def _pool_kernel(hidden_ref, mask_ref, num_ref, *, seq_len, tile_s, mask_tail):
    s = pl.program_id(1)                     # grid = (D-chunks, S-chunks)

    @pl.when(s == 0)
    def _init():
        num_ref[...] = jnp.zeros_like(num_ref)

    h = hidden_ref[...]                      # [B, tile_s, tile_d], native dtype
    m = mask_ref[...]                        # [B, tile_s] f32 (lane-dense)
    contrib = h * m[:, :, None]              # promotes to f32

    if mask_tail:
        # Last S tile may read out-of-bounds (undefined) rows: zero them via
        # jnp.where so even NaN garbage cannot leak into the accumulator.
        pos = s * tile_s + jax.lax.broadcasted_iota(jnp.int32, (1, tile_s, 1), 1)
        contrib = jnp.where(pos < seq_len, contrib, 0.0)

    num_ref[...] += jnp.sum(contrib, axis=1)  # accumulate into resident output


# ---------------------------------------------------------------------------
# Kernel (b): fused medical heads on the pooled vector (tiled over D = K axis)
# ---------------------------------------------------------------------------
def _heads_kernel(num_ref, den_ref, w1_ref, b1_ref, w2d_ref, b2d_ref,
                  w2t_ref, b2t_ref, w2r_ref, b2r_ref,
                  diag_ref, treat_ref, risk_ref, h1_acc, *, d2p, d4p):
    k = pl.program_id(0)

    @pl.when(k == 0)
    def _init():
        h1_acc[...] = jnp.zeros_like(h1_acc)

    # Exact masked-mean (PyTorch 0/0 -> nan/inf semantics preserved for rows
    # whose attention mask is all zeros).
    pooled_blk = num_ref[...] / den_ref[...]               # [B, tile_K] f32
    h1_acc[...] += jnp.dot(pooled_blk.astype(jnp.bfloat16), w1_ref[...],
                           preferred_element_type=jnp.float32)

    @pl.when(k == pl.num_programs(0) - 1)
    def _heads():
        h1 = jnp.maximum(h1_acc[...] + b1_ref[...], 0.0)   # ReLU (Dropout eval no-op)
        h1_bf = h1.astype(jnp.bfloat16)

        hd = h1_bf[:, 0:d2p]                    # diagnosis hidden (lane-aligned)
        ht = h1_bf[:, d2p:2 * d2p]              # treatment hidden
        hr = h1[:, 2 * d2p:2 * d2p + d4p]       # risk hidden (f32, VPU path)

        diag_ref[...] = (
            jnp.dot(hd, w2d_ref[...], preferred_element_type=jnp.float32)
            + b2d_ref[...])
        treat_ref[...] = (
            jnp.dot(ht, w2t_ref[...], preferred_element_type=jnp.float32)
            + b2t_ref[...])

        # Risk output dim is 1: VPU reduction instead of a wasted MXU pass.
        risk = jnp.sum(hr * w2r_ref[...], axis=-1, keepdims=True) + b2r_ref[...]
        risk_ref[...] = jax.nn.sigmoid(risk)


# ---------------------------------------------------------------------------
# One-time parameter packing (lane-padded, bf16 at the MXU).  NOT on the
# per-call path.
# ---------------------------------------------------------------------------
def pack_medical_head_params(params):
    (w1d, b1d, w2d, b2d, w1t, b1t, w2t, b2t, w1r, b1r, w2r, b2r) = params
    D = w1d.shape[0]
    d2, d4 = w1d.shape[1], w1r.shape[1]
    n_diag, n_treat = w2d.shape[1], w2t.shape[1]
    d2p, d4p = _round_up(d2, 128), _round_up(d4, 128)
    n_diag_p, n_treat_p = _round_up(n_diag, 128), _round_up(n_treat, 128)
    fused_n = 2 * d2p + d4p
    f32 = jnp.float32

    w1 = jnp.zeros((D, fused_n), f32)
    w1 = w1.at[:, 0:d2].set(w1d)
    w1 = w1.at[:, d2p:d2p + d2].set(w1t)
    w1 = w1.at[:, 2 * d2p:2 * d2p + d4].set(w1r)
    b1 = jnp.zeros((1, fused_n), f32)
    b1 = b1.at[0, 0:d2].set(b1d)
    b1 = b1.at[0, d2p:d2p + d2].set(b1t)
    b1 = b1.at[0, 2 * d2p:2 * d2p + d4].set(b1r)

    w2d_p = jnp.zeros((d2p, n_diag_p), f32).at[:d2, :n_diag].set(w2d)
    b2d_p = jnp.zeros((1, n_diag_p), f32).at[0, :n_diag].set(b2d)
    w2t_p = jnp.zeros((d2p, n_treat_p), f32).at[:d2, :n_treat].set(w2t)
    b2t_p = jnp.zeros((1, n_treat_p), f32).at[0, :n_treat].set(b2t)
    w2r_p = jnp.zeros((1, d4p), f32).at[0, :d4].set(w2r[:, 0])   # f32 (VPU path)
    b2r_p = jnp.reshape(b2r, (1, 1)).astype(f32)

    packed = (w1.astype(jnp.bfloat16), b1,
              w2d_p.astype(jnp.bfloat16), b2d_p,
              w2t_p.astype(jnp.bfloat16), b2t_p,
              w2r_p, b2r_p)
    packed = jax.tree_util.tree_map(jax.device_put, packed)
    return packed


# ---------------------------------------------------------------------------
# Wrapper: pooling kernel -> heads kernel
# ---------------------------------------------------------------------------
@functools.partial(jax.jit, static_argnames=("n_diag", "n_treat"))
def medical_lfm_heads(hidden_states, attention_mask, packed_params, *,
                      n_diag, n_treat):
    """Fused masked-mean pooling + diagnosis/treatment/risk heads."""
    B, S, D = hidden_states.shape
    (w1_bf, b1, w2d_p, b2d_p, w2t_p, b2t_p, w2r_p, b2r_p) = packed_params
    d2p = w2d_p.shape[0]
    fused_n = w1_bf.shape[1]
    d4p = fused_n - 2 * d2p
    n_diag_p, n_treat_p = w2d_p.shape[1], w2t_p.shape[1]
    f32 = jnp.float32

    mask_f32 = attention_mask.astype(f32)                 # [B, S], tiny
    den = jnp.sum(mask_f32, axis=1, keepdims=True)        # exact mask count

    # ------------------ kernel (a): streaming pooling ----------------------
    itemsize = hidden_states.dtype.itemsize
    tile_d, tile_s, vmem_cap_limit = _choose_pool_tiles(B, S, D, itemsize)
    nd = D // tile_d
    ns = pl.cdiv(S, tile_s)
    mask_tail = (S % tile_s) != 0

    pool_kernel = functools.partial(_pool_kernel, seq_len=S, tile_s=tile_s,
                                    mask_tail=mask_tail)

    hid_tile = B * tile_s * tile_d * itemsize
    pool_bytes = (2 * (hid_tile + B * tile_s * 4)          # dbl-buffered tiles
                  + 2 * B * tile_d * 4                     # output block
                  + (2 << 20))
    vmem_pool = int(min(max(pool_bytes, 8 << 20), vmem_cap_limit))

    num = pl.pallas_call(
        pool_kernel,
        out_shape=jax.ShapeDtypeStruct((B, D), f32),
        grid_spec=pltpu.PrefetchScalarGridSpec(
            num_scalar_prefetch=0,
            grid=(nd, ns),
            in_specs=[
                pl.BlockSpec((B, tile_s, tile_d), lambda d, s: (0, s, d)),
                pl.BlockSpec((B, tile_s), lambda d, s: (0, s)),
            ],
            out_specs=pl.BlockSpec((B, tile_d), lambda d, s: (0, d)),
        ),
        compiler_params=pltpu.CompilerParams(
            dimension_semantics=("parallel", "arbitrary"),
            vmem_limit_bytes=vmem_pool,
        ),
    )(hidden_states, mask_f32)

    # ------------------ kernel (b): heads on the pooled vector -------------
    tile_k = _choose_head_tile_k(D)
    nk = D // tile_k

    def _whole(x):
        ndim = x.ndim
        return pl.BlockSpec(x.shape, lambda k, _n=ndim: (0,) * _n)

    head_bytes = (2 * (tile_k * fused_n * 2                               # W1 block
                       + d2p * (n_diag_p + n_treat_p) * 2                 # W2 (bf16)
                       + (fused_n + n_diag_p + n_treat_p + d4p + 128) * 4  # biases
                       + B * (tile_k + 128) * 4                           # num + den
                       + B * (n_diag_p + n_treat_p + 128) * 4)            # outputs
                  + B * fused_n * 4                                       # h1 acc
                  + (2 << 20))
    vmem_heads = int(min(max(head_bytes, 8 << 20), vmem_cap_limit))

    heads_kernel = functools.partial(_heads_kernel, d2p=d2p, d4p=d4p)

    diag_p, treat_p, risk = pl.pallas_call(
        heads_kernel,
        out_shape=(
            jax.ShapeDtypeStruct((B, n_diag_p), f32),
            jax.ShapeDtypeStruct((B, n_treat_p), f32),
            jax.ShapeDtypeStruct((B, 1), f32),
        ),
        grid_spec=pltpu.PrefetchScalarGridSpec(
            num_scalar_prefetch=0,
            grid=(nk,),
            in_specs=[
                pl.BlockSpec((B, tile_k), lambda k: (0, k)),          # pooled num
                pl.BlockSpec((B, 1), lambda k: (0, 0)),               # mask count
                pl.BlockSpec((tile_k, fused_n), lambda k: (k, 0)),    # fused W1
                _whole(b1),
                _whole(w2d_p), _whole(b2d_p),
                _whole(w2t_p), _whole(b2t_p),
                _whole(w2r_p), _whole(b2r_p),
            ],
            out_specs=[
                pl.BlockSpec((B, n_diag_p), lambda k: (0, 0)),
                pl.BlockSpec((B, n_treat_p), lambda k: (0, 0)),
                pl.BlockSpec((B, 1), lambda k: (0, 0)),
            ],
            scratch_shapes=[pltpu.VMEM((B, fused_n), f32)],           # h1 accumulator
        ),
        compiler_params=pltpu.CompilerParams(
            dimension_semantics=("arbitrary",),
            vmem_limit_bytes=vmem_heads,
        ),
    )(num, den, w1_bf, b1, w2d_p, b2d_p, w2t_p, b2t_p, w2r_p, b2r_p)

    return {
        "diagnosis_logits": diag_p[:, :n_diag],
        "treatment_logits": treat_p[:, :n_treat],
        "risk_score": risk,
    }


# ---------------------------------------------------------------------------
# Synthetic parameters + pure-JAX reference
# ---------------------------------------------------------------------------
def init_medical_head_params(key, hidden_dim, n_diag=1000, n_treat=500):
    """Deterministic synthetic parameters matching MedicalLFM.add_medical_heads.

    Weights are stored [in, out] (transposed relative to torch's [out, in]) so
    y = x @ W + b matches F.linear. Biases are 1-D [out].
    """
    d2 = hidden_dim // 2
    d4 = hidden_dim // 4
    keys = jax.random.split(key, 12)
    scale = 0.02

    def lin(k, fi, fo):
        return scale * jax.random.normal(k, (fi, fo), jnp.float32)

    def bias(k, fo):
        return scale * jax.random.normal(k, (fo,), jnp.float32)

    w1d = lin(keys[0], hidden_dim, d2); b1d = bias(keys[6], d2)
    w2d = lin(keys[1], d2, n_diag);     b2d = bias(keys[7], n_diag)
    w1t = lin(keys[2], hidden_dim, d2); b1t = bias(keys[8], d2)
    w2t = lin(keys[3], d2, n_treat);    b2t = bias(keys[9], n_treat)
    w1r = lin(keys[4], hidden_dim, d4); b1r = bias(keys[10], d4)
    w2r = lin(keys[5], d4, 1);          b2r = bias(keys[11], 1)
    return (w1d, b1d, w2d, b2d, w1t, b1t, w2t, b2t, w1r, b1r, w2r, b2r)


def reference_heads(hidden_states, attention_mask, params):
    """Pure-JAX f32 reference of the same math (correctness check)."""
    (w1d, b1d, w2d, b2d, w1t, b1t, w2t, b2t, w1r, b1r, w2r, b2r) = params
    pooled = (hidden_states.astype(jnp.float32)
              * attention_mask[:, :, None]).sum(1) / \
        attention_mask.sum(1, keepdims=True)

    def mlp(x, w1, b1, w2, b2):
        return jnp.maximum(x @ w1 + b1, 0.0) @ w2 + b2

    return {
        "diagnosis_logits": mlp(pooled, w1d, b1d, w2d, b2d),
        "treatment_logits": mlp(pooled, w1t, b1t, w2t, b2t),
        "risk_score": jax.nn.sigmoid(mlp(pooled, w1r, b1r, w2r, b2r)),
    }


if __name__ == "__main__":
    # Small shapes consistent with the module: batch=2, seq=8, hidden=32.
    B, S, D = 2, 8, 32
    N_DIAG, N_TREAT = 1000, 500

    key = jax.random.PRNGKey(0)
    k_h, k_p = jax.random.split(key)

    # hidden_states stands in for base_model(...).last_hidden_state.
    hidden_states = jax.random.normal(k_h, (B, S, D), jnp.float32)
    # attention_mask with a couple of padded positions in the second row.
    attention_mask = jnp.ones((B, S), jnp.float32).at[1, 6:].set(0.0)

    params = init_medical_head_params(k_p, D, N_DIAG, N_TREAT)
    packed = pack_medical_head_params(params)     # one-time packing (off hot path)

    out = medical_lfm_heads(hidden_states, attention_mask, packed,
                            n_diag=N_DIAG, n_treat=N_TREAT)
    out = jax.tree_util.tree_map(jax.block_until_ready, out)

    ref = reference_heads(hidden_states, attention_mask, params)
    for name in ("diagnosis_logits", "treatment_logits", "risk_score"):
        assert out[name].shape == ref[name].shape, name
        # bf16 weights/activations at the MXU; division is exact now.
        assert jnp.allclose(out[name], ref[name], atol=2e-3, rtol=2e-2), (
            name, float(jnp.max(jnp.abs(out[name] - ref[name]))))

    print("KERNEL_OK")
</pallas_src>

<mosaic_0001>
module attributes {stable_mosaic.version = 11 : i64} {
  func.func @_pool_kernel(%arg0: i32, %arg1: i32, %arg2: memref<2x8x32xf32, #tpu.memory_space<vmem>>, %arg3: memref<2x8xf32, #tpu.memory_space<vmem>>, %arg4: memref<2x32xf32, #tpu.memory_space<vmem>>) attributes {dimension_semantics = [#tpu.dimension_semantics<parallel>, #tpu.dimension_semantics<arbitrary>], iteration_bounds = array<i64: 1, 1>, scalar_prefetch = 0 : i64, scratch_operands = 0 : i64, tpu.core_type = #tpu.core_type<tc>, window_params = [{transform_indices = @transform_0, window_bounds = array<i64: 2, 8, 32>}, {transform_indices = @transform_1, window_bounds = array<i64: 2, 8>}, {transform_indices = @transform_2, window_bounds = array<i64: 2, 32>}]} {
    %c0_i32 = arith.constant 0 : i32
    %0 = arith.cmpi eq, %arg1, %c0_i32 : i32
    %1 = arith.extui %0 : i1 to i32
    %c0_i32_0 = arith.constant 0 : i32
    %2 = arith.cmpi ne, %1, %c0_i32_0 : i32
    scf.if %2 {
      %cst_9 = arith.constant 0.000000e+00 : f32
      %12 = vector.broadcast %cst_9 : f32 to vector<2x32xf32>
      %c0_10 = arith.constant 0 : index
      %c0_11 = arith.constant 0 : index
      %13 = vector.load %arg4[%c0_10, %c0_11] : memref<2x32xf32, #tpu.memory_space<vmem>>, vector<2x32xf32>
      tpu.vector_store %arg4[%c0_10, %c0_11], %12 {strides = array<i32>} : memref<2x32xf32, #tpu.memory_space<vmem>>, vector<2x32xf32>,
    } else {
    }
    %c0 = arith.constant 0 : index
    %c0_1 = arith.constant 0 : index
    %c0_2 = arith.constant 0 : index
    %3 = vector.load %arg2[%c0, %c0_1, %c0_2] : memref<2x8x32xf32, #tpu.memory_space<vmem>>, vector<2x8x32xf32>
    %c0_3 = arith.constant 0 : index
    %c0_4 = arith.constant 0 : index
    %4 = vector.load %arg3[%c0_3, %c0_4] : memref<2x8xf32, #tpu.memory_space<vmem>>, vector<2x8xf32>
    %5 = vector.shape_cast %4 : vector<2x8xf32> to vector<2x8x1xf32>
    %6 = vector.broadcast %5 : vector<2x8x1xf32> to vector<2x8x32xf32>
    %7 = arith.mulf %3, %6 : vector<2x8x32xf32>
    %c0_5 = arith.constant 0 : index
    %c0_6 = arith.constant 0 : index
    %8 = vector.load %arg4[%c0_5, %c0_6] : memref<2x32xf32, #tpu.memory_space<vmem>>, vector<2x32xf32>
    %cst = arith.constant dense<0.000000e+00> : vector<2x32xf32>
    %9 = vector.multi_reduction <add>, %7, %cst [1] : vector<2x8x32xf32> to vector<2x32xf32>
    %10 = arith.addf %8, %9 : vector<2x32xf32>
    %c0_7 = arith.constant 0 : index
    %c0_8 = arith.constant 0 : index
    %11 = vector.load %arg4[%c0_7, %c0_8] : memref<2x32xf32, #tpu.memory_space<vmem>>, vector<2x32xf32>
    tpu.vector_store %arg4[%c0_7, %c0_8], %10 {strides = array<i32>} : memref<2x32xf32, #tpu.memory_space<vmem>>, vector<2x32xf32>,
    return
  }
  func.func @transform_0(%arg0: i32, %arg1: i32) -> (i32, i32, i32) {
    %c0_i32 = arith.constant 0 : i32
    %c0_i32_0 = arith.constant 0 : i32
    return %c0_i32, %arg1, %arg0 : i32, i32, i32
  }
  func.func @transform_1(%arg0: i32, %arg1: i32) -> (i32, i32) {
    %c0_i32 = arith.constant 0 : i32
    %c0_i32_0 = arith.constant 0 : i32
    return %c0_i32, %arg1 : i32, i32
  }
  func.func @transform_2(%arg0: i32, %arg1: i32) -> (i32, i32) {
    %c0_i32 = arith.constant 0 : i32
    %c0_i32_0 = arith.constant 0 : i32
    return %c0_i32, %arg0 : i32, i32
  }
}

module attributes {stable_mosaic.version = 11 : i64} {
  func.func @_heads_kernel(%arg0: i32, %arg1: memref<2x32xf32, #tpu.memory_space<vmem>>, %arg2: memref<2x1xf32, #tpu.memory_space<vmem>>, %arg3: memref<32x384xbf16, #tpu.memory_space<vmem>>, %arg4: memref<1x384xf32, #tpu.memory_space<vmem>>, %arg5: memref<128x1024xbf16, #tpu.memory_space<vmem>>, %arg6: memref<1x1024xf32, #tpu.memory_space<vmem>>, %arg7: memref<128x512xbf16, #tpu.memory_space<vmem>>, %arg8: memref<1x512xf32, #tpu.memory_space<vmem>>, %arg9: memref<1x128xf32, #tpu.memory_space<vmem>>, %arg10: memref<1x1xf32, #tpu.memory_space<vmem>>, %arg11: memref<2x1024xf32, #tpu.memory_space<vmem>>, %arg12: memref<2x512xf32, #tpu.memory_space<vmem>>, %arg13: memref<2x1xf32, #tpu.memory_space<vmem>>, %arg14: memref<2x384xf32, #tpu.memory_space<vmem>>) attributes {dimension_semantics = [#tpu.dimension_semantics<arbitrary>], iteration_bounds = array<i64: 1>, scalar_prefetch = 0 : i64, scratch_operands = 1 : i64, tpu.core_type = #tpu.core_type<tc>, window_params = [{transform_indices = @transform_0, window_bounds = array<i64: 2, 32>}, {pipeline_mode = #tpu.pipeline_mode<synchronous>, transform_indices = @transform_1, window_bounds = array<i64: 2, 1>}, {transform_indices = @transform_2, window_bounds = array<i64: 32, 384>}, {pipeline_mode = #tpu.pipeline_mode<synchronous>, transform_indices = @transform_3, window_bounds = array<i64: 1, 384>}, {pipeline_mode = #tpu.pipeline_mode<synchronous>, transform_indices = @transform_4, window_bounds = array<i64: 128, 1024>}, {pipeline_mode = #tpu.pipeline_mode<synchronous>, transform_indices = @transform_5, window_bounds = array<i64: 1, 1024>}, {pipeline_mode = #tpu.pipeline_mode<synchronous>, transform_indices = @transform_6, window_bounds = array<i64: 128, 512>}, {pipeline_mode = #tpu.pipeline_mode<synchronous>, transform_indices = @transform_7, window_bounds = array<i64: 1, 512>}, {pipeline_mode = #tpu.pipeline_mode<synchronous>, transform_indices = @transform_8, window_bounds = array<i64: 1, 128>}, {pipeline_mode = #tpu.pipeline_mode<synchronous>, transform_indices = @transform_9, window_bounds = array<i64: 1, 1>}, {pipeline_mode = #tpu.pipeline_mode<synchronous>, transform_indices = @transform_10, window_bounds = array<i64: 2, 1024>}, {pipeline_mode = #tpu.pipeline_mode<synchronous>, transform_indices = @transform_11, window_bounds = array<i64: 2, 512>}, {pipeline_mode = #tpu.pipeline_mode<synchronous>, transform_indices = @transform_12, window_bounds = array<i64: 2, 1>}]} {
    %c0_i32 = arith.constant 0 : i32
    %0 = arith.cmpi eq, %arg0, %c0_i32 : i32
    %1 = arith.extui %0 : i1 to i32
    %c0_i32_0 = arith.constant 0 : i32
    %2 = arith.cmpi ne, %1, %c0_i32_0 : i32
    scf.if %2 {
      %cst_12 = arith.constant 0.000000e+00 : f32
      %16 = vector.broadcast %cst_12 : f32 to vector<2x384xf32>
      %c0_13 = arith.constant 0 : index
      %c0_14 = arith.constant 0 : index
      %17 = vector.load %arg14[%c0_13, %c0_14] : memref<2x384xf32, #tpu.memory_space<vmem>>, vector<2x384xf32>
      tpu.vector_store %arg14[%c0_13, %c0_14], %16 {strides = array<i32>} : memref<2x384xf32, #tpu.memory_space<vmem>>, vector<2x384xf32>,
    } else {
    }
    %c0 = arith.constant 0 : index
    %c0_1 = arith.constant 0 : index
    %3 = vector.load %arg1[%c0, %c0_1] : memref<2x32xf32, #tpu.memory_space<vmem>>, vector<2x32xf32>
    %c0_2 = arith.constant 0 : index
    %c0_3 = arith.constant 0 : index
    %4 = vector.load %arg2[%c0_2, %c0_3] : memref<2x1xf32, #tpu.memory_space<vmem>>, vector<2x1xf32>
    %5 = vector.broadcast %4 : vector<2x1xf32> to vector<2x32xf32>
    %6 = arith.divf %3, %5 : vector<2x32xf32>
    %c0_4 = arith.constant 0 : index
    %c0_5 = arith.constant 0 : index
    %7 = vector.load %arg14[%c0_4, %c0_5] : memref<2x384xf32, #tpu.memory_space<vmem>>, vector<2x384xf32>
    %8 = arith.truncf %6 : vector<2x32xf32> to vector<2x32xbf16>
    %c0_6 = arith.constant 0 : index
    %c0_7 = arith.constant 0 : index
    %9 = vector.load %arg3[%c0_6, %c0_7] : memref<32x384xbf16, #tpu.memory_space<vmem>>, vector<32x384xbf16>
    %cst = arith.constant dense<0.000000e+00> : vector<2x384xf32>
    %10 = tpu.matmul %8, %9, %cst {dimension_numbers = #tpu.dot_dimension_numbers<[1], [0], [0], [1], [0, 0, 1, 1], [], []>} : vector<2x32xbf16>, vector<32x384xbf16>, vector<2x384xf32> -> vector<2x384xf32>
    %11 = arith.addf %7, %10 : vector<2x384xf32>
    %c0_8 = arith.constant 0 : index
    %c0_9 = arith.constant 0 : index
    %12 = vector.load %arg14[%c0_8, %c0_9] : memref<2x384xf32, #tpu.memory_space<vmem>>, vector<2x384xf32>
    tpu.vector_store %arg14[%c0_8, %c0_9], %11 {strides = array<i32>} : memref<2x384xf32, #tpu.memory_space<vmem>>, vector<2x384xf32>,
    %c0_i32_10 = arith.constant 0 : i32
    %13 = arith.cmpi eq, %arg0, %c0_i32_10 : i32
    %14 = arith.extui %13 : i1 to i32
    %c0_i32_11 = arith.constant 0 : i32
    %15 = arith.cmpi ne, %14, %c0_i32_11 : i32
    scf.if %15 {
      %c0_12 = arith.constant 0 : index
      %c0_13 = arith.constant 0 : index
      %16 = vector.load %arg14[%c0_12, %c0_13] : memref<2x384xf32, #tpu.memory_space<vmem>>, vector<2x384xf32>
      %c0_14 = arith.constant 0 : index
      %c0_15 = arith.constant 0 : index
      %17 = vector.load %arg4[%c0_14, %c0_15] : memref<1x384xf32, #tpu.memory_space<vmem>>, vector<1x384xf32>
      %18 = vector.broadcast %17 : vector<1x384xf32> to vector<2x384xf32>
      %19 = arith.addf %16, %18 : vector<2x384xf32>
      %cst_16 = arith.constant 0.000000e+00 : f32
      %20 = vector.broadcast %cst_16 : f32 to vector<2x384xf32>
      %21 = arith.maximumf %19, %20 : vector<2x384xf32>
      %22 = arith.truncf %21 : vector<2x384xf32> to vector<2x384xbf16>
      %23 = vector.extract_strided_slice %22 {offsets = [0, 0], sizes = [2, 128], strides = [1, 1]} : vector<2x384xbf16> to vector<2x128xbf16>
      %24 = vector.extract_strided_slice %22 {offsets = [0, 128], sizes = [2, 128], strides = [1, 1]} : vector<2x384xbf16> to vector<2x128xbf16>
      %25 = vector.extract_strided_slice %21 {offsets = [0, 256], sizes = [2, 128], strides = [1, 1]} : vector<2x384xf32> to vector<2x128xf32>
      %c0_17 = arith.constant 0 : index
      %c0_18 = arith.constant 0 : index
      %26 = vector.load %arg5[%c0_17, %c0_18] : memref<128x1024xbf16, #tpu.memory_space<vmem>>, vector<128x1024xbf16>
      %cst_19 = arith.constant dense<0.000000e+00> : vector<2x1024xf32>
      %27 = tpu.matmul %23, %26, %cst_19 {dimension_numbers = #tpu.dot_dimension_numbers<[1], [0], [0], [1], [0, 0, 1, 1], [], []>} : vector<2x128xbf16>, vector<128x1024xbf16>, vector<2x1024xf32> -> vector<2x1024xf32>
      %c0_20 = arith.constant 0 : index
      %c0_21 = arith.constant 0 : index
      %28 = vector.load %arg6[%c0_20, %c0_21] : memref<1x1024xf32, #tpu.memory_space<vmem>>, vector<1x1024xf32>
      %29 = vector.broadcast %28 : vector<1x1024xf32> to vector<2x1024xf32>
      %30 = arith.addf %27, %29 : vector<2x1024xf32>
      %c0_22 = arith.constant 0 : index
      %c0_23 = arith.constant 0 : index
      %31 = vector.load %arg11[%c0_22, %c0_23] : memref<2x1024xf32, #tpu.memory_space<vmem>>, vector<2x1024xf32>
      tpu.vector_store %arg11[%c0_22, %c0_23], %30 {strides = array<i32>} : memref<2x1024xf32, #tpu.memory_space<vmem>>, vector<2x1024xf32>,
      %c0_24 = arith.constant 0 : index
      %c0_25 = arith.constant 0 : index
      %32 = vector.load %arg7[%c0_24, %c0_25] : memref<128x512xbf16, #tpu.memory_space<vmem>>, vector<128x512xbf16>
      %cst_26 = arith.constant dense<0.000000e+00> : vector<2x512xf32>
      %33 = tpu.matmul %24, %32, %cst_26 {dimension_numbers = #tpu.dot_dimension_numbers<[1], [0], [0], [1], [0, 0, 1, 1], [], []>} : vector<2x128xbf16>, vector<128x512xbf16>, vector<2x512xf32> -> vector<2x512xf32>
      %c0_27 = arith.constant 0 : index
      %c0_28 = arith.constant 0 : index
      %34 = vector.load %arg8[%c0_27, %c0_28] : memref<1x512xf32, #tpu.memory_space<vmem>>, vector<1x512xf32>
      %35 = vector.broadcast %34 : vector<1x512xf32> to vector<2x512xf32>
      %36 = arith.addf %33, %35 : vector<2x512xf32>
      %c0_29 = arith.constant 0 : index
      %c0_30 = arith.constant 0 : index
      %37 = vector.load %arg12[%c0_29, %c0_30] : memref<2x512xf32, #tpu.memory_space<vmem>>, vector<2x512xf32>
      tpu.vector_store %arg12[%c0_29, %c0_30], %36 {strides = array<i32>} : memref<2x512xf32, #tpu.memory_space<vmem>>, vector<2x512xf32>,
      %c0_31 = arith.constant 0 : index
      %c0_32 = arith.constant 0 : index
      %38 = vector.load %arg9[%c0_31, %c0_32] : memref<1x128xf32, #tpu.memory_space<vmem>>, vector<1x128xf32>
      %39 = vector.broadcast %38 : vector<1x128xf32> to vector<2x128xf32>
      %40 = arith.mulf %25, %39 : vector<2x128xf32>
      %cst_33 = arith.constant dense<0.000000e+00> : vector<2xf32>
      %41 = vector.multi_reduction <add>, %40, %cst_33 [1] : vector<2x128xf32> to vector<2xf32>
      %42 = vector.shape_cast %41 : vector<2xf32> to vector<2x1xf32>
      %c0_34 = arith.constant 0 : index
      %c0_35 = arith.constant 0 : index
      %43 = vector.load %arg10[%c0_34, %c0_35] : memref<1x1xf32, #tpu.memory_space<vmem>>, vector<1x1xf32>
      %44 = vector.broadcast %43 : vector<1x1xf32> to vector<2x1xf32>
      %45 = arith.addf %42, %44 : vector<2x1xf32>
      %46 = arith.negf %45 : vector<2x1xf32>
      %47 = math.exp %46 : vector<2x1xf32>
      %cst_36 = arith.constant 1.000000e+00 : f32
      %48 = vector.broadcast %cst_36 : f32 to vector<2x1xf32>
      %49 = arith.addf %48, %47 : vector<2x1xf32>
      %50 = arith.divf %48, %49 : vector<2x1xf32>
      %c0_37 = arith.constant 0 : index
      %c0_38 = arith.constant 0 : index
      %51 = vector.load %arg13[%c0_37, %c0_38] : memref<2x1xf32, #tpu.memory_space<vmem>>, vector<2x1xf32>
      tpu.vector_store %arg13[%c0_37, %c0_38], %50 {strides = array<i32>} : memref<2x1xf32, #tpu.memory_space<vmem>>, vector<2x1xf32>,
    } else {
    }
    return
  }
  func.func @transform_0(%arg0: i32) -> (i32, i32) {
    %c0_i32 = arith.constant 0 : i32
    %c0_i32_0 = arith.constant 0 : i32
    return %c0_i32, %arg0 : i32, i32
  }
  func.func @transform_1(%arg0: i32) -> (i32, i32) {
    %c0_i32 = arith.constant 0 : i32
    %c0_i32_0 = arith.constant 0 : i32
    %c0_i32_1 = arith.constant 0 : i32
    return %c0_i32, %c0_i32_0 : i32, i32
  }
  func.func @transform_2(%arg0: i32) -> (i32, i32) {
    %c0_i32 = arith.constant 0 : i32
    %c0_i32_0 = arith.constant 0 : i32
    return %arg0, %c0_i32 : i32, i32
  }
  func.func @transform_3(%arg0: i32) -> (i32, i32) {
    %c0_i32 = arith.constant 0 : i32
    %c0_i32_0 = arith.constant 0 : i32
    %c0_i32_1 = arith.constant 0 : i32
    return %c0_i32, %c0_i32_0 : i32, i32
  }
  func.func @transform_4(%arg0: i32) -> (i32, i32) {
    %c0_i32 = arith.constant 0 : i32
    %c0_i32_0 = arith.constant 0 : i32
    %c0_i32_1 = arith.constant 0 : i32
    return %c0_i32, %c0_i32_0 : i32, i32
  }
  func.func @transform_5(%arg0: i32) -> (i32, i32) {
    %c0_i32 = arith.constant 0 : i32
    %c0_i32_0 = arith.constant 0 : i32
    %c0_i32_1 = arith.constant 0 : i32
    return %c0_i32, %c0_i32_0 : i32, i32
  }
  func.func @transform_6(%arg0: i32) -> (i32, i32) {
    %c0_i32 = arith.constant 0 : i32
    %c0_i32_0 = arith.constant 0 : i32
    %c0_i32_1 = arith.constant 0 : i32
    return %c0_i32, %c0_i32_0 : i32, i32
  }
  func.func @transform_7(%arg0: i32) -> (i32, i32) {
    %c0_i32 = arith.constant 0 : i32
    %c0_i32_0 = arith.constant 0 : i32
    %c0_i32_1 = arith.constant 0 : i32
    return %c0_i32, %c0_i32_0 : i32, i32
  }
  func.func @transform_8(%arg0: i32) -> (i32, i32) {
    %c0_i32 = arith.constant 0 : i32
    %c0_i32_0 = arith.constant 0 : i32
    %c0_i32_1 = arith.constant 0 : i32
    return %c0_i32, %c0_i32_0 : i32, i32
  }
  func.func @transform_9(%arg0: i32) -> (i32, i32) {
    %c0_i32 = arith.constant 0 : i32
    %c0_i32_0 = arith.constant 0 : i32
    %c0_i32_1 = arith.constant 0 : i32
    return %c0_i32, %c0_i32_0 : i32, i32
  }
  func.func @transform_10(%arg0: i32) -> (i32, i32) {
    %c0_i32 = arith.constant 0 : i32
    %c0_i32_0 = arith.constant 0 : i32
    %c0_i32_1 = arith.constant 0 : i32
    return %c0_i32, %c0_i32_0 : i32, i32
  }
  func.func @transform_11(%arg0: i32) -> (i32, i32) {
    %c0_i32 = arith.constant 0 : i32
    %c0_i32_0 = arith.constant 0 : i32
    %c0_i32_1 = arith.constant 0 : i32
    return %c0_i32, %c0_i32_0 : i32, i32
  }
  func.func @transform_12(%arg0: i32) -> (i32, i32) {
    %c0_i32 = arith.constant 0 : i32
    %c0_i32_0 = arith.constant 0 : i32
    %c0_i32_1 = arith.constant 0 : i32
    return %c0_i32, %c0_i32_0 : i32, i32
  }
}

</mosaic_0001>

<llo_original>
// kernel: medical_lfm_heads.2
$region0: #{medical_lfm_heads.2}
  #allocation0 [shape = 'u32[]', space=smem, size = 0x4, offset = 0x4, fixed_abs, tag = 'smem constant byte address 0x4 - core index']
  #allocation1 [shape = 'u32[144,128]{1,0:T(1,128)}', space=vmem, size = 0x12000, scoped, tag = 'internal scratch']
  %s0 = inlined_call_operand.hbm [shape: f32[2,8,32], index: 0, kind: input, shape index: {}]
  %s1 = inlined_call_operand.vmem [shape: f32[2,8], index: 1, kind: input, shape index: {}]
  %s2 = inlined_call_operand.vmem [shape: f32[2,32], index: 2, kind: output, shape index: {}]
  %s3 = sld [smem:[#allocation0]]
  $region26: #{medical_lfm_heads.2} parent=0
    _
  %s5 = ssub.s32 1, %s3
  %s6 = scalar_select 0, %s5, %s3
  $region1: #{medical_lfm_heads.2} parent=0
    #allocation2 [shape = 'u8[8192]{0}', space=vmem, size = 0x2000, scoped, tag = 'input window, operand 0, single buffered']
    #allocation3 [shape = 's32[1]{0}', space=sflag, size = 0x4, scoped, tag = 'scoped memory for medical_lfm_heads.2']
    %7 = vsyncpa [#allocation3], 0
    // Predicated region
    $region2: #{medical_lfm_heads.2} parent=1 // pred_check
      _
    $region3: #{medical_lfm_heads.2} parent=1 // pred_check_branch
      %9 = sbr.rel (0) target = $region5
    $region4: #{medical_lfm_heads.2} parent=1 // pred_region
      %s11 = ssub.s32 256, 256
      %12 = vsyncadd [#allocation3], %s11
      %s13 = sshll.u32 [#allocation2], 4
      %s14 = int_to_ptr.vmem [resolvable:$true] %s13
      %19 = dma.hbm_to_vmem [thread:$0]  %s0, 256, %s14, [#allocation3], 128, 128, 8
    $region5: #{medical_lfm_heads.2} parent=1 // pred_fallthru
      _
    // Predicated region
    $region6: #{medical_lfm_heads.2} parent=1 // pred_check
      _
    $region7: #{medical_lfm_heads.2} parent=1 // pred_check_branch
      %21 = sbr.rel (0) target = $region9
    $region8: #{medical_lfm_heads.2} parent=1 // pred_region
      _
    $region9: #{medical_lfm_heads.2} parent=1 // pred_fallthru
      _
    // Predicated region
    $region10: #{medical_lfm_heads.2} parent=1 // pred_check
      _
    $region11: #{medical_lfm_heads.2} parent=1 // pred_check_branch
      %23 = sbr.rel (0) target = $region13
    $region12: #{medical_lfm_heads.2} parent=1 // pred_region
      %24 = dma.done [#allocation3], 256
    $region13: #{medical_lfm_heads.2} parent=1 // pred_fallthru
      _
    %p25 = scmp.eq.s32.totalorder 0, 0
    // Predicated region
    $region14: #{medical_lfm_heads.2} parent=1 // pred_check
      %p26 = pneg %p25
    $region15: #{medical_lfm_heads.2} parent=1 // pred_check_branch
      %28 = sbr.rel (%p26) target = $region17
    $region16: #{medical_lfm_heads.2} parent=1 // pred_region
      %vm29 = vcmask 254976
      %30 = vst.msk [vmem:[%s2] sm:$0x3] %vm29, 0.0
    $region17: #{medical_lfm_heads.2} parent=1 // pred_fallthru
      _
    %v31 = vld [vmem:[#allocation2] sm:$0xff]
    %v32 = vld [vmem:[#allocation2 + $0x8] sm:$0xff]
    %v33 = vld [vmem:[%s1] sm:$0x3]
    %v34 = vlaneseq
    %v35 = vshrl.u32 %v34, 7
    %v36 = vsub.s32 0, %v35
    %v37 = vrot.slane %v33, %v36
    %39 = vbcast.lane.b32.xlu0 %v37, 256
    %v40 = vpop.permute.xlu0 %39
    %v41 = vlaneseq
    %v42 = vshrl.u32 %v41, 7
    %v43 = vsub.s32 1, %v42
    %v44 = vrot.slane %v33, %v43
    %46 = vbcast.lane.b32.xlu0 %v44, 256
    %v47 = vpop.permute.xlu0 %46
    %v48 = vmul.f32 %v31, %v40
    %v49 = vmul.f32 %v32, %v47
    %v50 = vld [vmem:[%s2] sm:$0x3]
    %vm51 = vcmask 261120
    %v52 = vsel %vm51, %v48, 0.0
    %v53 = vrot.slane %v52, 4
    %v54 = vadd.f32 %v52, %v53
    %v55 = vrot.slane %v54, 2
    %v56 = vadd.f32 %v54, %v55
    %v57 = vrot.slane %v56, 1
    %v58 = vadd.f32 %v56, %v57
    %v59 = vsel %vm51, %v49, 0.0
    %v60 = vrot.slane %v59, 4
    %v61 = vadd.f32 %v59, %v60
    %v62 = vrot.slane %v61, 2
    %v63 = vadd.f32 %v61, %v62
    %v64 = vrot.slane %v63, 1
    %v65 = vadd.f32 %v63, %v64
    %vm68 = vcmask 1041409
    %v69 = vsel %vm68, %v65, %v58
    %v71 = vadd.f32 %v50, %v69
    %vm72 = vcmask 254976
    %73 = vst.msk [vmem:[%s2] sm:$0x3] %vm72, %v71
    // Predicated region
    $region18: #{medical_lfm_heads.2} parent=1 // pred_check
      _
    $region19: #{medical_lfm_heads.2} parent=1 // pred_check_branch
      %75 = sbr.rel (0) target = $region21
    $region20: #{medical_lfm_heads.2} parent=1 // pred_region
      _
    $region21: #{medical_lfm_heads.2} parent=1 // pred_fallthru
      _
    // Predicated region
    $region22: #{medical_lfm_heads.2} parent=1 // pred_check
      _
    $region23: #{medical_lfm_heads.2} parent=1 // pred_check_branch
      %77 = sbr.rel (0) target = $region25
    $region24: #{medical_lfm_heads.2} parent=1 // pred_region
      _
    $region25: #{medical_lfm_heads.2} parent=1 // pred_fallthru
      _
    %78 = vsyncpa [#allocation3], 1

// kernel: medical_lfm_heads.3
$region0: #{medical_lfm_heads.3}
  #allocation0 [shape = 'u32[]', space=smem, size = 0x4, offset = 0x4, fixed_abs, tag = 'smem constant byte address 0x4 - core index']
  #allocation1 [shape = 'u32[144,128]{1,0:T(1,128)}', space=vmem, size = 0x12000, scoped, tag = 'internal scratch']
  #allocation2 [shape = 'f32[2,384]{1,0:T(2,128)}', space=vmem, size = 0xc00, scoped, tag = 'scratch operand']
  #allocation3 [shape = 'f32[1,1]{1,0:T(1,128)S(1)}', space=vmem, size = 0x200, scoped, tag = 'scoped memory for medical_lfm_heads.3']
  %s0 = inlined_call_operand.vmem [shape: f32[2,32], index: 0, kind: input, shape index: {}]
  %s1 = inlined_call_operand.vmem [shape: f32[2,1], index: 1, kind: input, shape index: {}]
  %s2 = inlined_call_operand.hbm [shape: bf16[32,384], index: 2, kind: input, shape index: {}]
  %s3 = inlined_call_operand.vmem [shape: f32[1,384], index: 3, kind: input, shape index: {}]
  %s4 = inlined_call_operand.hbm [shape: bf16[128,1024], index: 4, kind: input, shape index: {}]
  %s5 = inlined_call_operand.vmem [shape: f32[1,1024], index: 5, kind: input, shape index: {}]
  %s6 = inlined_call_operand.hbm [shape: bf16[128,512], index: 6, kind: input, shape index: {}]
  %s7 = inlined_call_operand.vmem [shape: f32[1,512], index: 7, kind: input, shape index: {}]
  %s8 = inlined_call_operand.vmem [shape: f32[1,128], index: 8, kind: input, shape index: {}]
  %s9 = inlined_call_operand.<no memory space> [shape: f32[1,1], index: 9, kind: input, shape index: {}]
  %s10 = inlined_call_operand.hbm [shape: f32[2,1024], index: 10, kind: output, shape index: {0}]
  %s11 = inlined_call_operand.hbm [shape: f32[2,512], index: 11, kind: output, shape index: {1}]
  %s12 = inlined_call_operand.vmem [shape: f32[2,1], index: 12, kind: output, shape index: {2}]
  %13 = xla_tuple %s10, %s11, %s12
  %s14 = sld [smem:[#allocation0]]
  $region86: #{medical_lfm_heads.3} parent=0
    _
  %s16 = ssub.s32 1, %s14
  %s17 = scalar_select 0, %s16, %s14
  %v18 = vstv %s9
  %19 = vst [vmem:[#allocation3] sm:$0x1] %v18
  $region1: #{medical_lfm_heads.3} parent=0
    #allocation4 [shape = 'u8[24576]{0}', space=vmem, size = 0x6000, scoped, tag = 'input window, operand 2, single buffered']
    #allocation5 [shape = 's32[1]{0}', space=sflag, size = 0x4, scoped, tag = 'scoped memory for medical_lfm_heads.3']
    #allocation6 [shape = 's32[1]{0}', space=sflag, size = 0x4, scoped, tag = 'scoped memory for medical_lfm_heads.3']
    #allocation7 [shape = 'u8[262144]{0}', space=vmem, size = 0x40000, scoped, tag = 'input window, operand 4, single buffered']
    #allocation8 [shape = 's32[1]{0}', space=sflag, size = 0x4, scoped, tag = 'scoped memory for medical_lfm_heads.3']
    #allocation9 [shape = 'u8[131072]{0}', space=vmem, size = 0x20000, scoped, tag = 'input window, operand 6, single buffered']
    #allocation10 [shape = 'u8[8192]{0}', space=vmem, size = 0x2000, scoped, tag = 'output window, operand 0, single buffered']
    #allocation11 [shape = 'u8[4096]{0}', space=vmem, size = 0x1000, scoped, tag = 'output window, operand 1, single buffered']
    #allocation12 [shape = 's32[1]{0}', space=sflag, size = 0x4, scoped, tag = 'scoped memory for medical_lfm_heads.3']
    %20 = vsyncpa [#allocation5], 0
    %21 = vsyncpa [#allocation8], 0
    %22 = vsyncpa [#allocation6], 0
    %23 = vsyncpa [#allocation12], 0
    // Predicated region
    $region2: #{medical_lfm_heads.3} parent=1 // pred_check
      _
    $region3: #{medical_lfm_heads.3} parent=1 // pred_check_branch
      %25 = sbr.rel (0) target = $region5
    $region4: #{medical_lfm_heads.3} parent=1 // pred_region
      _
    $region5: #{medical_lfm_heads.3} parent=1 // pred_fallthru
      _
    // Predicated region
    $region6: #{medical_lfm_heads.3} parent=1 // pred_check
      _
    $region7: #{medical_lfm_heads.3} parent=1 // pred_check_branch
      %27 = sbr.rel (0) target = $region9
    $region8: #{medical_lfm_heads.3} parent=1 // pred_region
      _
    $region9: #{medical_lfm_heads.3} parent=1 // pred_fallthru
      _
    // Predicated region
    $region10: #{medical_lfm_heads.3} parent=1 // pred_check
      _
    $region11: #{medical_lfm_heads.3} parent=1 // pred_check_branch
      %29 = sbr.rel (0) target = $region13
    $region12: #{medical_lfm_heads.3} parent=1 // pred_region
      %s31 = ssub.s32 768, 768
      %32 = vsyncadd [#allocation5], %s31
      %s33 = sshll.u32 [#allocation4], 4
      %s34 = int_to_ptr.vmem [resolvable:$true] %s33
      %39 = dma.hbm_to_vmem [thread:$0]  %s2, 768, %s34, [#allocation5], 192, 192, 12
    $region13: #{medical_lfm_heads.3} parent=1 // pred_fallthru
      _
    // Predicated region
    $region14: #{medical_lfm_heads.3} parent=1 // pred_check
      _
    $region15: #{medical_lfm_heads.3} parent=1 // pred_check_branch
      %41 = sbr.rel (0) target = $region17
    $region16: #{medical_lfm_heads.3} parent=1 // pred_region
      _
    $region17: #{medical_lfm_heads.3} parent=1 // pred_fallthru
      _
    // Predicated region
    $region18: #{medical_lfm_heads.3} parent=1 // pred_check
      _
    $region19: #{medical_lfm_heads.3} parent=1 // pred_check_branch
      %43 = sbr.rel (0) target = $region21
    $region20: #{medical_lfm_heads.3} parent=1 // pred_region
      %s45 = ssub.s32 8192, 8192
      %46 = vsyncadd [#allocation8], %s45
      %s47 = sshll.u32 [#allocation7], 4
      %s48 = int_to_ptr.vmem [resolvable:$true] %s47
      %53 = dma.hbm_to_vmem [thread:$0]  %s4, 8192, %s48, [#allocation8], 512, 512, 32
    $region21: #{medical_lfm_heads.3} parent=1 // pred_fallthru
      _
    // Predicated region
    $region22: #{medical_lfm_heads.3} parent=1 // pred_check
      _
    $region23: #{medical_lfm_heads.3} parent=1 // pred_check_branch
      %55 = sbr.rel (0) target = $region25
    $region24: #{medical_lfm_heads.3} parent=1 // pred_region
      _
    $region25: #{medical_lfm_heads.3} parent=1 // pred_fallthru
      _
    // Predicated region
    $region26: #{medical_lfm_heads.3} parent=1 // pred_check
      _
    $region27: #{medical_lfm_heads.3} parent=1 // pred_check_branch
      %57 = sbr.rel (0) target = $region29
    $region28: #{medical_lfm_heads.3} parent=1 // pred_region
      %s59 = ssub.s32 4096, 4096
      %60 = vsyncadd [#allocation8], %s59
      %s61 = sshll.u32 [#allocation9], 4
      %s62 = int_to_ptr.vmem [resolvable:$true] %s61
      %67 = dma.hbm_to_vmem [thread:$0]  %s6, 4096, %s62, [#allocation8], 256, 256, 16
    $region29: #{medical_lfm_heads.3} parent=1 // pred_fallthru
      _
    // Predicated region
    $region30: #{medical_lfm_heads.3} parent=1 // pred_check
      _
    $region31: #{medical_lfm_heads.3} parent=1 // pred_check_branch
      %69 = sbr.rel (0) target = $region33
    $region32: #{medical_lfm_heads.3} parent=1 // pred_region
      _
    $region33: #{medical_lfm_heads.3} parent=1 // pred_fallthru
      _
    // Predicated region
    $region34: #{medical_lfm_heads.3} parent=1 // pred_check
      _
    $region35: #{medical_lfm_heads.3} parent=1 // pred_check_branch
      %71 = sbr.rel (0) target = $region37
    $region36: #{medical_lfm_heads.3} parent=1 // pred_region
      _
    $region37: #{medical_lfm_heads.3} parent=1 // pred_fallthru
      _
    // Predicated region
    $region38: #{medical_lfm_heads.3} parent=1 // pred_check
      _
    $region39: #{medical_lfm_heads.3} parent=1 // pred_check_branch
      %73 = sbr.rel (0) target = $region41
    $region40: #{medical_lfm_heads.3} parent=1 // pred_region
      _
    $region41: #{medical_lfm_heads.3} parent=1 // pred_fallthru
      _
    // Predicated region
    $region42: #{medical_lfm_heads.3} parent=1 // pred_check
      _
    $region43: #{medical_lfm_heads.3} parent=1 // pred_check_branch
      %75 = sbr.rel (0) target = $region45
    $region44: #{medical_lfm_heads.3} parent=1 // pred_region
      %76 = dma.done [#allocation5], 768
    $region45: #{medical_lfm_heads.3} parent=1 // pred_fallthru
      _
    // Predicated region
    $region46: #{medical_lfm_heads.3} parent=1 // pred_check
      _
    $region47: #{medical_lfm_heads.3} parent=1 // pred_check_branch
      %78 = sbr.rel (0) target = $region49
    $region48: #{medical_lfm_heads.3} parent=1 // pred_region
      %79 = dma.done [#allocation8], 8192
    $region49: #{medical_lfm_heads.3} parent=1 // pred_fallthru
      _
    // Predicated region
    $region50: #{medical_lfm_heads.3} parent=1 // pred_check
      _
    $region51: #{medical_lfm_heads.3} parent=1 // pred_check_branch
      %81 = sbr.rel (0) target = $region53
    $region52: #{medical_lfm_heads.3} parent=1 // pred_region
      %82 = dma.done [#allocation8], 4096
    $region53: #{medical_lfm_heads.3} parent=1 // pred_fallthru
      _
    %p84 = scmp.eq.s32.totalorder 0, 0
    // Predicated region
    $region54: #{medical_lfm_heads.3} parent=1 // pred_check
      %p85 = pneg %p84
    $region55: #{medical_lfm_heads.3} parent=1 // pred_check_branch
      %87 = sbr.rel (%p85) target = $region57
    $region56: #{medical_lfm_heads.3} parent=1 // pred_region
      %88 = vst [vmem:[#allocation2] sm:$0x3f] 0.0
    $region57: #{medical_lfm_heads.3} parent=1 // pred_fallthru
      _
    %v89 = vld [vmem:[%s0] sm:$0x3]
    %v90 = vld [vmem:[%s1] sm:$0x3]
    %92 = vset.pattern.permute.xlu0 0
    %93 = vperm.xlu0 %92, %v90
    %v94 = vpop.permute.xlu0 %93
    %v96 = vrcp.pop %v94
    %v97 = vmul.f32 %v89, %v96
    %v98 = vld [vmem:[#allocation2] sm:$0x3f]
    %v99 = vpack.c.bf16 %v97, %v97
    %v100 = vld [vmem:[#allocation4] sm:$0xff]
    %v101 = vld [vmem:[#allocation4 + $0x8] sm:$0xf]
    %v102 = vld [vmem:[#allocation4 + $0xc] sm:$0xff]
    %v103 = vld [vmem:[#allocation4 + $0x14] sm:$0xf]
    %v104 = vld [vmem:[#allocation4 + $0x18] sm:$0xff]
    %v105 = vld [vmem:[#allocation4 + $0x20] sm:$0xf]
    %v106 = vld [vmem:[#allocation4 + $0x24] sm:$0xff]
    %v107 = vld [vmem:[#allocation4 + $0x2c] sm:$0xf]
    %v116 = vunpack.c.l.b16 %v100
    %v117 = vunpack.c.h.b16 %v100
    %v118 = vunpack.c.l.b16 %v101
    %v119 = vunpack.c.l.b16 %v102
    %v120 = vunpack.c.h.b16 %v102
    %v121 = vunpack.c.l.b16 %v103
    %v122 = vunpack.c.l.b16 %v104
    %v123 = vunpack.c.h.b16 %v104
    %v124 = vunpack.c.l.b16 %v105
    %v125 = vunpack.c.l.b16 %v106
    %v126 = vunpack.c.h.b16 %v106
    %v127 = vunpack.c.l.b16 %v107
    %v128 = vpack.c.b16 %v119, %v116
    %v129 = vpack.c.b16 %v120, %v117
    %v130 = vpack.c.b16 %v121, %v118
    %v131 = vpack.c.b16 %v125, %v122
    %v132 = vpack.c.b16 %v126, %v123
    %v133 = vpack.c.b16 %v127, %v124
    %vm140 = vcmask 261120
    %v142 = vsel %vm140, %v99, 0
    %144 = vmatprep.subr.bf16.mxu0 %v129
    %145 = vmatpush1.bf16.msra.mxu0 %v128
    %146 = vmatprep.subr.bf16.mxu0 %v132
    %147 = vmatpush1.bf16.msra.mxu0 %v131
    %148 = vmatprep.subr.bf16.mxu0 0
    %149 = vmatpush1.bf16.msra.mxu0 0
    %150 = vmatprep.subr.bf16.mxu0 0
    %151 = vmatpush1.bf16.msra.mxu0 0
    %152 = vmatprep.subr.bf16.mxu0 0
    %153 = vmatpush1.bf16.msra.mxu0 0
    %154 = vmatprep.subr.bf16.mxu0 0
    %155 = vmatpush1.bf16.msra.mxu0 0
    %156 = vmatprep.subr.bf16.mxu0 0
    %157 = vmatpush1.bf16.msra.mxu0 0
    %158 = vmatprep.subr.bf16.mxu0 0
    %159 = vmatpush1.bf16.msra.mxu0 0
    %160 = vmatprep.subr.bf16.mxu0 0
    %161 = vmatpush1.bf16.msra.mxu0 0
    %162 = vmatprep.subr.bf16.mxu0 0
    %163 = vmatpush1.bf16.msra.mxu0 0
    %164 = vmatprep.subr.bf16.mxu0 0
    %165 = vmatpush1.bf16.msra.mxu0 0
    %166 = vmatprep.subr.bf16.mxu0 0
    %167 = vmatpush1.bf16.msra.mxu0 0
    %168 = vmatprep.subr.bf16.mxu0 0
    %169 = vmatpush1.bf16.msra.mxu0 0
    %170 = vmatprep.subr.bf16.mxu0 0
    %171 = vmatpush1.bf16.msra.mxu0 0
    %172 = vmatprep.subr.bf16.mxu0 0
    %173 = vmatpush1.bf16.msra.mxu0 0
    %174 = vmatprep.subr.bf16.mxu0 0
    %175 = vmatpush1.bf16.msra.mxu0 0
    %176 = vmatprep.mubr.bf16.mxu0 0
    %177 = vmatmul.mubr.bf16.gmra.mrb[0].mxu0 %v142
    %v178 = vpop.f32.mrb[0].mxu0
    %v179 = vadd.f32 0.0, %v178
    %v180 = vpop.f32.mrb[0].mxu0
    %v181 = vadd.f32 0.0, %v180
    %v182 = vpop.f32.mrb[0].mxu0
    %v183 = vpop.f32.mrb[0].mxu0
    %184 = vdwg.mxu0
    %185 = vmatprep.subr.bf16.mxu0 0
    %186 = vmatpush1.bf16.msra.mxu0 %v130
    %187 = vmatprep.subr.bf16.mxu0 0
    %188 = vmatpush1.bf16.msra.mxu0 %v133
    %189 = vmatprep.subr.bf16.mxu0 0
    %190 = vmatpush1.bf16.msra.mxu0 0
    %191 = vmatprep.subr.bf16.mxu0 0
    %192 = vmatpush1.bf16.msra.mxu0 0
    %193 = vmatprep.subr.bf16.mxu0 0
    %194 = vmatpush1.bf16.msra.mxu0 0
    %195 = vmatprep.subr.bf16.mxu0 0
    %196 = vmatpush1.bf16.msra.mxu0 0
    %197 = vmatprep.subr.bf16.mxu0 0
    %198 = vmatpush1.bf16.msra.mxu0 0
    %199 = vmatprep.subr.bf16.mxu0 0
    %200 = vmatpush1.bf16.msra.mxu0 0
    %201 = vmatprep.subr.bf16.mxu0 0
    %202 = vmatpush1.bf16.msra.mxu0 0
    %203 = vmatprep.subr.bf16.mxu0 0
    %204 = vmatpush1.bf16.msra.mxu0 0
    %205 = vmatprep.subr.bf16.mxu0 0
    %206 = vmatpush1.bf16.msra.mxu0 0
    %207 = vmatprep.subr.bf16.mxu0 0
    %208 = vmatpush1.bf16.msra.mxu0 0
    %209 = vmatprep.subr.bf16.mxu0 0
    %210 = vmatpush1.bf16.msra.mxu0 0
    %211 = vmatprep.subr.bf16.mxu0 0
    %212 = vmatpush1.bf16.msra.mxu0 0
    %213 = vmatprep.subr.bf16.mxu0 0
    %214 = vmatpush1.bf16.msra.mxu0 0
    %215 = vmatprep.subr.bf16.mxu0 0
    %216 = vmatpush1.bf16.msra.mxu0 0
    %217 = vmatprep.mubr.bf16.mxu0 0
    %218 = vmatmul.mubr.bf16.gmra.mrb[0].mxu0 %v142
    %v219 = vpop.f32.mrb[0].mxu0
    %v220 = vadd.f32 0.0, %v219
    %v221 = vpop.f32.mrb[0].mxu0
    %v222 = vpop.f32.mrb[0].mxu0
    %v223 = vpop.f32.mrb[0].mxu0
    %224 = vdwg.mxu0
    %v228 = vcombine.low %v179, %v181
    %v230 = vunpack.c.l.s4 1983009808
    %v231 = vunpack.c.0.s8 %v230
    %v232 = vlaneseq
    %v233 = vshrl.u32 %v232, 7
    %v234 = vsub.s32 %v231, %v233
    %v235 = vrot.slane %v228, %v234
    %v237 = vunpack.c.l.s4 1983009808
    %v238 = vunpack.c.0.s8 %v237
    %v239 = vlaneseq
    %v240 = vshrl.u32 %v239, 7
    %v241 = vsub.s32 %v238, %v240
    %v242 = vrot.slane %v220, %v241
    %v243 = vcombine.low %v235, %v242
    %v245 = vadd.f32 %v98, %v243
    %246 = vst [vmem:[#allocation2] sm:$0x3f] %v245
    // Predicated region
    $region58: #{medical_lfm_heads.3} parent=1 // pred_check
      %p247 = pneg %p84
    $region59: #{medical_lfm_heads.3} parent=1 // pred_check_branch
      %249 = sbr.rel (%p247) target = $region61
    $region60: #{medical_lfm_heads.3} parent=1 // pred_region
      %v250 = vld [vmem:[#allocation2] sm:$0x3f]
      %v251 = vld [vmem:[%s3] sm:$0x7]
      %v253 = vlaneseq
      %v254 = vshrl.u32 %v253, 7
      %v255 = vsub.s32 0, %v254
      %v256 = vrot.slane %v251, %v255
      %v257 = vlaneseq
      %v258 = vshrl.u32 %v257, 7
      %v259 = vsub.s32 1, %v258
      %v260 = vrot.slane %v251, %v259
      %v261 = vlaneseq
      %v262 = vshrl.u32 %v261, 7
      %v263 = vsub.s32 2, %v262
      %v264 = vrot.slane %v251, %v263
      %v265 = vcombine.low %v256, %v260
      %v267 = vunpack.c.l.s4 1983009808
      %v268 = vunpack.c.0.s8 %v267
      %v269 = vlaneseq
      %v270 = vshrl.u32 %v269, 7
      %v271 = vsub.s32 %v268, %v270
      %v272 = vrot.slane %v265, %v271
      %v274 = vunpack.c.l.s4 1983009808
      %v275 = vunpack.c.0.s8 %v274
      %v276 = vlaneseq
      %v277 = vshrl.u32 %v276, 7
      %v278 = vsub.s32 %v275, %v277
      %v279 = vrot.slane %v264, %v278
      %v280 = vcombine.low %v272, %v279
      %v282 = vadd.f32 %v250, %v280
      %v283 = vmax.f32 %v282, 0.0
      %v286 = vunpack.c.l.s4 1983009808
      %v287 = vunpack.c.0.s8 %v286
      %v288 = vlaneseq
      %v289 = vshrl.u32 %v288, 7
      %v290 = vsub.s32 %v287, %v289
      %v291 = vrot.slane %v283, %v290
      %v292 = vcombine.high %v291, %v291
      %v295 = vpack.c.bf16 %v291, %v291
      %v296 = vpack.c.bf16 %v292, %v292
      %v297 = vld [vmem:[#allocation7] sm:$0xff]
      %v298 = vld [vmem:[#allocation7 + $0x8] sm:$0xff]
      %v299 = vld [vmem:[#allocation7 + $0x10] sm:$0xff]
      %v300 = vld [vmem:[#allocation7 + $0x18] sm:$0xff]
      %v301 = vld [vmem:[#allocation7 + $0x20] sm:$0xff]
      %v302 = vld [vmem:[#allocation7 + $0x28] sm:$0xff]
      %v303 = vld [vmem:[#allocation7 + $0x30] sm:$0xff]
      %v304 = vld [vmem:[#allocation7 + $0x38] sm:$0xff]
      %v305 = vld [vmem:[#allocation7 + $0x40] sm:$0xff]
      %v306 = vld [vmem:[#allocation7 + $0x48] sm:$0xff]
      %v307 = vld [vmem:[#allocation7 + $0x50] sm:$0xff]
      %v308 = vld [vmem:[#allocation7 + $0x58] sm:$0xff]
      %v309 = vld [vmem:[#allocation7 + $0x60] sm:$0xff]
      %v310 = vld [vmem:[#allocation7 + $0x68] sm:$0xff]
      %v311 = vld [vmem:[#allocation7 + $0x70] sm:$0xff]
      %v312 = vld [vmem:[#allocation7 + $0x78] sm:$0xff]
      %v313 = vld [vmem:[#allocation7 + $0x80] sm:$0xff]
      %v314 = vld [vmem:[#allocation7 + $0x88] sm:$0xff]
      %v315 = vld [vmem:[#allocation7 + $0x90] sm:$0xff]
      %v316 = vld [vmem:[#allocation7 + $0x98] sm:$0xff]
      %v317 = vld [vmem:[#allocation7 + $0xa0] sm:$0xff]
      %v318 = vld [vmem:[#allocation7 + $0xa8] sm:$0xff]
      %v319 = vld [vmem:[#allocation7 + $0xb0] sm:$0xff]
      %v320 = vld [vmem:[#allocation7 + $0xb8] sm:$0xff]
      %v321 = vld [vmem:[#allocation7 + $0xc0] sm:$0xff]
      %v322 = vld [vmem:[#allocation7 + $0xc8] sm:$0xff]
      %v323 = vld [vmem:[#allocation7 + $0xd0] sm:$0xff]
      %v324 = vld [vmem:[#allocation7 + $0xd8] sm:$0xff]
      %v325 = vld [vmem:[#allocation7 + $0xe0] sm:$0xff]
      %v326 = vld [vmem:[#allocation7 + $0xe8] sm:$0xff]
      %v327 = vld [vmem:[#allocation7 + $0xf0] sm:$0xff]
      %v328 = vld [vmem:[#allocation7 + $0xf8] sm:$0xff]
      %v329 = vld [vmem:[#allocation7 + $0x100] sm:$0xff]
      %v330 = vld [vmem:[#allocation7 + $0x108] sm:$0xff]
      %v331 = vld [vmem:[#allocation7 + $0x110] sm:$0xff]
      %v332 = vld [vmem:[#allocation7 + $0x118] sm:$0xff]
      %v333 = vld [vmem:[#allocation7 + $0x120] sm:$0xff]
      %v334 = vld [vmem:[#allocation7 + $0x128] sm:$0xff]
      %v335 = vld [vmem:[#allocation7 + $0x130] sm:$0xff]
      %v336 = vld [vmem:[#allocation7 + $0x138] sm:$0xff]
      %v337 = vld [vmem:[#allocation7 + $0x140] sm:$0xff]
      %v338 = vld [vmem:[#allocation7 + $0x148] sm:$0xff]
      %v339 = vld [vmem:[#allocation7 + $0x150] sm:$0xff]
      %v340 = vld [vmem:[#allocation7 + $0x158] sm:$0xff]
      %v341 = vld [vmem:[#allocation7 + $0x160] sm:$0xff]
      %v342 = vld [vmem:[#allocation7 + $0x168] sm:$0xff]
      %v343 = vld [vmem:[#allocation7 + $0x170] sm:$0xff]
      %v344 = vld [vmem:[#allocation7 + $0x178] sm:$0xff]
      %v345 = vld [vmem:[#allocation7 + $0x180] sm:$0xff]
      %v346 = vld [vmem:[#allocation7 + $0x188] sm:$0xff]
      %v347 = vld [vmem:[#allocation7 + $0x190] sm:$0xff]
      %v348 = vld [vmem:[#allocation7 + $0x198] sm:$0xff]
      %v349 = vld [vmem:[#allocation7 + $0x1a0] sm:$0xff]
      %v350 = vld [vmem:[#allocation7 + $0x1a8] sm:$0xff]
      %v351 = vld [vmem:[#allocation7 + $0x1b0] sm:$0xff]
      %v352 = vld [vmem:[#allocation7 + $0x1b8] sm:$0xff]
      %v353 = vld [vmem:[#allocation7 + $0x1c0] sm:$0xff]
      %v354 = vld [vmem:[#allocation7 + $0x1c8] sm:$0xff]
      %v355 = vld [vmem:[#allocation7 + $0x1d0] sm:$0xff]
      %v356 = vld [vmem:[#allocation7 + $0x1d8] sm:$0xff]
      %v357 = vld [vmem:[#allocation7 + $0x1e0] sm:$0xff]
      %v358 = vld [vmem:[#allocation7 + $0x1e8] sm:$0xff]
      %v359 = vld [vmem:[#allocation7 + $0x1f0] sm:$0xff]
      %v360 = vld [vmem:[#allocation7 + $0x1f8] sm:$0xff]
      %v361 = vld [vmem:[%s5] sm:$0xff]
      %v363 = vlaneseq
      %v364 = vshrl.u32 %v363, 7
      %v365 = vsub.s32 0, %v364
      %v366 = vrot.slane %v361, %v365
      %v367 = vlaneseq
      %v368 = vshrl.u32 %v367, 7
      %v369 = vsub.s32 1, %v368
      %v370 = vrot.slane %v361, %v369
      %v371 = vlaneseq
      %v372 = vshrl.u32 %v371, 7
      %v373 = vsub.s32 2, %v372
      %v374 = vrot.slane %v361, %v373
      %v375 = vlaneseq
      %v376 = vshrl.u32 %v375, 7
      %v377 = vsub.s32 3, %v376
      %v378 = vrot.slane %v361, %v377
      %v379 = vlaneseq
      %v380 = vshrl.u32 %v379, 7
      %v381 = vsub.s32 4, %v380
      %v382 = vrot.slane %v361, %v381
      %v383 = vlaneseq
      %v384 = vshrl.u32 %v383, 7
      %v385 = vsub.s32 5, %v384
      %v386 = vrot.slane %v361, %v385
      %v387 = vlaneseq
      %v388 = vshrl.u32 %v387, 7
      %v389 = vsub.s32 6, %v388
      %v390 = vrot.slane %v361, %v389
      %v391 = vlaneseq
      %v392 = vshrl.u32 %v391, 7
      %v393 = vsub.s32 7, %v392
      %v394 = vrot.slane %v361, %v393
      %v467 = vunpack.c.l.b16 %v297
      %v468 = vunpack.c.h.b16 %v297
      %v469 = vunpack.c.l.b16 %v298
      %v470 = vunpack.c.h.b16 %v298
      %v471 = vunpack.c.l.b16 %v299
      %v472 = vunpack.c.h.b16 %v299
      %v473 = vunpack.c.l.b16 %v300
      %v474 = vunpack.c.h.b16 %v300
      %v475 = vunpack.c.l.b16 %v301
      %v476 = vunpack.c.h.b16 %v301
      %v477 = vunpack.c.l.b16 %v302
      %v478 = vunpack.c.h.b16 %v302
      %v479 = vunpack.c.l.b16 %v303
      %v480 = vunpack.c.h.b16 %v303
      %v481 = vunpack.c.l.b16 %v304
      %v482 = vunpack.c.h.b16 %v304
      %v483 = vunpack.c.l.b16 %v305
      %v484 = vunpack.c.h.b16 %v305
      %v485 = vunpack.c.l.b16 %v306
      %v486 = vunpack.c.h.b16 %v306
      %v487 = vunpack.c.l.b16 %v307
      %v488 = vunpack.c.h.b16 %v307
      %v489 = vunpack.c.l.b16 %v308
      %v490 = vunpack.c.h.b16 %v308
      %v491 = vunpack.c.l.b16 %v309
      %v492 = vunpack.c.h.b16 %v309
      %v493 = vunpack.c.l.b16 %v310
      %v494 = vunpack.c.h.b16 %v310
      %v495 = vunpack.c.l.b16 %v311
      %v496 = vunpack.c.h.b16 %v311
      %v497 = vunpack.c.l.b16 %v312
      %v498 = vunpack.c.h.b16 %v312
      %v499 = vunpack.c.l.b16 %v313
      %v500 = vunpack.c.h.b16 %v313
      %v501 = vunpack.c.l.b16 %v314
      %v502 = vunpack.c.h.b16 %v314
      %v503 = vunpack.c.l.b16 %v315
      %v504 = vunpack.c.h.b16 %v315
      %v505 = vunpack.c.l.b16 %v316
      %v506 = vunpack.c.h.b16 %v316
      %v507 = vunpack.c.l.b16 %v317
      %v508 = vunpack.c.h.b16 %v317
      %v509 = vunpack.c.l.b16 %v318
      %v510 = vunpack.c.h.b16 %v318
      %v511 = vunpack.c.l.b16 %v319
      %v512 = vunpack.c.h.b16 %v319
      %v513 = vunpack.c.l.b16 %v320
      %v514 = vunpack.c.h.b16 %v320
      %v515 = vunpack.c.l.b16 %v321
      %v516 = vunpack.c.h.b16 %v321
      %v517 = vunpack.c.l.b16 %v322
      %v518 = vunpack.c.h.b16 %v322
      %v519 = vunpack.c.l.b16 %v323
      %v520 = vunpack.c.h.b16 %v323
      %v521 = vunpack.c.l.b16 %v324
      %v522 = vunpack.c.h.b16 %v324
      %v523 = vunpack.c.l.b16 %v325
      %v524 = vunpack.c.h.b16 %v325
      %v525 = vunpack.c.l.b16 %v326
      %v526 = vunpack.c.h.b16 %v326
      %v527 = vunpack.c.l.b16 %v327
      %v528 = vunpack.c.h.b16 %v327
      %v529 = vunpack.c.l.b16 %v328
      %v530 = vunpack.c.h.b16 %v328
      %v531 = vunpack.c.l.b16 %v329
      %v532 = vunpack.c.h.b16 %v329
      %v533 = vunpack.c.l.b16 %v330
      %v534 = vunpack.c.h.b16 %v330
      %v535 = vunpack.c.l.b16 %v331
      %v536 = vunpack.c.h.b16 %v331
      %v537 = vunpack.c.l.b16 %v332
      %v538 = vunpack.c.h.b16 %v332
      %v539 = vunpack.c.l.b16 %v333
      %v540 = vunpack.c.h.b16 %v333
      %v541 = vunpack.c.l.b16 %v334
      %v542 = vunpack.c.h.b16 %v334
      %v543 = vunpack.c.l.b16 %v335
      %v544 = vunpack.c.h.b16 %v335
      %v545 = vunpack.c.l.b16 %v336
      %v546 = vunpack.c.h.b16 %v336
      %v547 = vunpack.c.l.b16 %v337
      %v548 = vunpack.c.h.b16 %v337
      %v549 = vunpack.c.l.b16 %v338
      %v550 = vunpack.c.h.b16 %v338
      %v551 = vunpack.c.l.b16 %v339
      %v552 = vunpack.c.h.b16 %v339
      %v553 = vunpack.c.l.b16 %v340
      %v554 = vunpack.c.h.b16 %v340
      %v555 = vunpack.c.l.b16 %v341
      %v556 = vunpack.c.h.b16 %v341
      %v557 = vunpack.c.l.b16 %v342
      %v558 = vunpack.c.h.b16 %v342
      %v559 = vunpack.c.l.b16 %v343
      %v560 = vunpack.c.h.b16 %v343
      %v561 = vunpack.c.l.b16 %v344
      %v562 = vunpack.c.h.b16 %v344
      %v563 = vunpack.c.l.b16 %v345
      %v564 = vunpack.c.h.b16 %v345
      %v565 = vunpack.c.l.b16 %v346
      %v566 = vunpack.c.h.b16 %v346
      %v567 = vunpack.c.l.b16 %v347
      %v568 = vunpack.c.h.b16 %v347
      %v569 = vunpack.c.l.b16 %v348
      %v570 = vunpack.c.h.b16 %v348
      %v571 = vunpack.c.l.b16 %v349
      %v572 = vunpack.c.h.b16 %v349
      %v573 = vunpack.c.l.b16 %v350
      %v574 = vunpack.c.h.b16 %v350
      %v575 = vunpack.c.l.b16 %v351
      %v576 = vunpack.c.h.b16 %v351
      %v577 = vunpack.c.l.b16 %v352
      %v578 = vunpack.c.h.b16 %v352
      %v579 = vunpack.c.l.b16 %v353
      %v580 = vunpack.c.h.b16 %v353
      %v581 = vunpack.c.l.b16 %v354
      %v582 = vunpack.c.h.b16 %v354
      %v583 = vunpack.c.l.b16 %v355
      %v584 = vunpack.c.h.b16 %v355
      %v585 = vunpack.c.l.b16 %v356
      %v586 = vunpack.c.h.b16 %v356
      %v587 = vunpack.c.l.b16 %v357
      %v588 = vunpack.c.h.b16 %v357
      %v589 = vunpack.c.l.b16 %v358
      %v590 = vunpack.c.h.b16 %v358
      %v591 = vunpack.c.l.b16 %v359
      %v592 = vunpack.c.h.b16 %v359
      %v593 = vunpack.c.l.b16 %v360
      %v594 = vunpack.c.h.b16 %v360
      %v595 = vpack.c.b16 %v475, %v467
      %v596 = vpack.c.b16 %v476, %v468
      %v597 = vpack.c.b16 %v477, %v469
      %v598 = vpack.c.b16 %v478, %v470
      %v599 = vpack.c.b16 %v479, %v471
      %v600 = vpack.c.b16 %v480, %v472
      %v601 = vpack.c.b16 %v481, %v473
      %v602 = vpack.c.b16 %v482, %v474
      %v603 = vpack.c.b16 %v491, %v483
      %v604 = vpack.c.b16 %v492, %v484
      %v605 = vpack.c.b16 %v493, %v485
      %v606 = vpack.c.b16 %v494, %v486
      %v607 = vpack.c.b16 %v495, %v487
      %v608 = vpack.c.b16 %v496, %v488
      %v609 = vpack.c.b16 %v497, %v489
      %v610 = vpack.c.b16 %v498, %v490
      %v611 = vpack.c.b16 %v507, %v499
      %v612 = vpack.c.b16 %v508, %v500
      %v613 = vpack.c.b16 %v509, %v501
      %v614 = vpack.c.b16 %v510, %v502
      %v615 = vpack.c.b16 %v511, %v503
      %v616 = vpack.c.b16 %v512, %v504
      %v617 = vpack.c.b16 %v513, %v505
      %v618 = vpack.c.b16 %v514, %v506
      %v619 = vpack.c.b16 %v523, %v515
      %v620 = vpack.c.b16 %v524, %v516
      %v621 = vpack.c.b16 %v525, %v517
      %v622 = vpack.c.b16 %v526, %v518
      %v623 = vpack.c.b16 %v527, %v519
      %v624 = vpack.c.b16 %v528, %v520
      %v625 = vpack.c.b16 %v529, %v521
      %v626 = vpack.c.b16 %v530, %v522
      %v627 = vpack.c.b16 %v539, %v531
      %v628 = vpack.c.b16 %v540, %v532
      %v629 = vpack.c.b16 %v541, %v533
      %v630 = vpack.c.b16 %v542, %v534
      %v631 = vpack.c.b16 %v543, %v535
      %v632 = vpack.c.b16 %v544, %v536
      %v633 = vpack.c.b16 %v545, %v537
      %v634 = vpack.c.b16 %v546, %v538
      %v635 = vpack.c.b16 %v555, %v547
      %v636 = vpack.c.b16 %v556, %v548
      %v637 = vpack.c.b16 %v557, %v549
      %v638 = vpack.c.b16 %v558, %v550
      %v639 = vpack.c.b16 %v559, %v551
      %v640 = vpack.c.b16 %v560, %v552
      %v641 = vpack.c.b16 %v561, %v553
      %v642 = vpack.c.b16 %v562, %v554
      %v643 = vpack.c.b16 %v571, %v563
      %v644 = vpack.c.b16 %v572, %v564
      %v645 = vpack.c.b16 %v573, %v565
      %v646 = vpack.c.b16 %v574, %v566
      %v647 = vpack.c.b16 %v575, %v567
      %v648 = vpack.c.b16 %v576, %v568
      %v649 = vpack.c.b16 %v577, %v569
      %v650 = vpack.c.b16 %v578, %v570
      %v651 = vpack.c.b16 %v587, %v579
      %v652 = vpack.c.b16 %v588, %v580
      %v653 = vpack.c.b16 %v589, %v581
      %v654 = vpack.c.b16 %v590, %v582
      %v655 = vpack.c.b16 %v591, %v583
      %v656 = vpack.c.b16 %v592, %v584
      %v657 = vpack.c.b16 %v593, %v585
      %v658 = vpack.c.b16 %v594, %v586
      %723 = vmatprep.subr.bf16.mxu0 %v596
      %724 = vmatpush1.bf16.msra.mxu0 %v595
      %725 = vmatprep.subr.bf16.mxu0 %v604
      %726 = vmatpush1.bf16.msra.mxu0 %v603
      %727 = vmatprep.subr.bf16.mxu0 %v612
      %728 = vmatpush1.bf16.msra.mxu0 %v611
      %729 = vmatprep.subr.bf16.mxu0 %v620
      %730 = vmatpush1.bf16.msra.mxu0 %v619
      %731 = vmatprep.subr.bf16.mxu0 %v628
      %732 = vmatpush1.bf16.msra.mxu0 %v627
      %733 = vmatprep.subr.bf16.mxu0 %v636
      %734 = vmatpush1.bf16.msra.mxu0 %v635
      %735 = vmatprep.subr.bf16.mxu0 %v644
      %736 = vmatpush1.bf16.msra.mxu0 %v643
      %737 = vmatprep.subr.bf16.mxu0 %v652
      %738 = vmatpush1.bf16.msra.mxu0 %v651
      %739 = vmatprep.subr.bf16.mxu0 0
      %740 = vmatpush1.bf16.msra.mxu0 0
      %741 = vmatprep.subr.bf16.mxu0 0
      %742 = vmatpush1.bf16.msra.mxu0 0
      %743 = vmatprep.subr.bf16.mxu0 0
      %744 = vmatpush1.bf16.msra.mxu0 0
      %745 = vmatprep.subr.bf16.mxu0 0
      %746 = vmatpush1.bf16.msra.mxu0 0
      %747 = vmatprep.subr.bf16.mxu0 0
      %748 = vmatpush1.bf16.msra.mxu0 0
      %749 = vmatprep.subr.bf16.mxu0 0
      %750 = vmatpush1.bf16.msra.mxu0 0
      %751 = vmatprep.subr.bf16.mxu0 0
      %752 = vmatpush1.bf16.msra.mxu0 0
      %753 = vmatprep.subr.bf16.mxu0 0
      %754 = vmatpush1.bf16.msra.mxu0 0
      %755 = vmatprep.mubr.bf16.mxu0 0
      %756 = vmatmul.mubr.bf16.gmra.mrb[0].mxu0 %v295
      %v757 = vpop.f32.mrb[0].mxu0
      %v758 = vadd.f32 %v366, %v757
      %v759 = vpop.f32.mrb[0].mxu0
      %v760 = vadd.f32 %v370, %v759
      %v761 = vpop.f32.mrb[0].mxu0
      %v762 = vpop.f32.mrb[0].mxu0
      %763 = vdwg.mxu0
      %764 = vmatprep.subr.bf16.mxu0 %v598
      %765 = vmatpush1.bf16.msra.mxu0 %v597
      %766 = vmatprep.subr.bf16.mxu0 %v606
      %767 = vmatpush1.bf16.msra.mxu0 %v605
      %768 = vmatprep.subr.bf16.mxu0 %v614
      %769 = vmatpush1.bf16.msra.mxu0 %v613
      %770 = vmatprep.subr.bf16.mxu0 %v622
      %771 = vmatpush1.bf16.msra.mxu0 %v621
      %772 = vmatprep.subr.bf16.mxu0 %v630
      %773 = vmatpush1.bf16.msra.mxu0 %v629
      %774 = vmatprep.subr.bf16.mxu0 %v638
      %775 = vmatpush1.bf16.msra.mxu0 %v637
      %776 = vmatprep.subr.bf16.mxu0 %v646
      %777 = vmatpush1.bf16.msra.mxu0 %v645
      %778 = vmatprep.subr.bf16.mxu0 %v654
      %779 = vmatpush1.bf16.msra.mxu0 %v653
      %780 = vmatprep.subr.bf16.mxu0 0
      %781 = vmatpush1.bf16.msra.mxu0 0
      %782 = vmatprep.subr.bf16.mxu0 0
      %783 = vmatpush1.bf16.msra.mxu0 0
      %784 = vmatprep.subr.bf16.mxu0 0
      %785 = vmatpush1.bf16.msra.mxu0 0
      %786 = vmatprep.subr.bf16.mxu0 0
      %787 = vmatpush1.bf16.msra.mxu0 0
      %788 = vmatprep.subr.bf16.mxu0 0
      %789 = vmatpush1.bf16.msra.mxu0 0
      %790 = vmatprep.subr.bf16.mxu0 0
      %791 = vmatpush1.bf16.msra.mxu0 0
      %792 = vmatprep.subr.bf16.mxu0 0
      %793 = vmatpush1.bf16.msra.mxu0 0
      %794 = vmatprep.subr.bf16.mxu0 0
      %795 = vmatpush1.bf16.msra.mxu0 0
      %796 = vmatprep.mubr.bf16.mxu0 0
      %797 = vmatmul.mubr.bf16.gmra.mrb[0].mxu0 %v295
      %v798 = vpop.f32.mrb[0].mxu0
      %v799 = vadd.f32 %v374, %v798
      %v800 = vpop.f32.mrb[0].mxu0
      %v801 = vadd.f32 %v378, %v800
      %v802 = vpop.f32.mrb[0].mxu0
      %v803 = vpop.f32.mrb[0].mxu0
      %804 = vdwg.mxu0
      %805 = vmatprep.subr.bf16.mxu0 %v600
      %806 = vmatpush1.bf16.msra.mxu0 %v599
      %807 = vmatprep.subr.bf16.mxu0 %v608
      %808 = vmatpush1.bf16.msra.mxu0 %v607
      %809 = vmatprep.subr.bf16.mxu0 %v616
      %810 = vmatpush1.bf16.msra.mxu0 %v615
      %811 = vmatprep.subr.bf16.mxu0 %v624
      %812 = vmatpush1.bf16.msra.mxu0 %v623
      %813 = vmatprep.subr.bf16.mxu0 %v632
      %814 = vmatpush1.bf16.msra.mxu0 %v631
      %815 = vmatprep.subr.bf16.mxu0 %v640
      %816 = vmatpush1.bf16.msra.mxu0 %v639
      %817 = vmatprep.subr.bf16.mxu0 %v648
      %818 = vmatpush1.bf16.msra.mxu0 %v647
      %819 = vmatprep.subr.bf16.mxu0 %v656
      %820 = vmatpush1.bf16.msra.mxu0 %v655
      %821 = vmatprep.subr.bf16.mxu0 0
      %822 = vmatpush1.bf16.msra.mxu0 0
      %823 = vmatprep.subr.bf16.mxu0 0
      %824 = vmatpush1.bf16.msra.mxu0 0
      %825 = vmatprep.subr.bf16.mxu0 0
      %826 = vmatpush1.bf16.msra.mxu0 0
      %827 = vmatprep.subr.bf16.mxu0 0
      %828 = vmatpush1.bf16.msra.mxu0 0
      %829 = vmatprep.subr.bf16.mxu0 0
      %830 = vmatpush1.bf16.msra.mxu0 0
      %831 = vmatprep.subr.bf16.mxu0 0
      %832 = vmatpush1.bf16.msra.mxu0 0
      %833 = vmatprep.subr.bf16.mxu0 0
      %834 = vmatpush1.bf16.msra.mxu0 0
      %835 = vmatprep.subr.bf16.mxu0 0
      %836 = vmatpush1.bf16.msra.mxu0 0
      %837 = vmatprep.mubr.bf16.mxu0 0
      %838 = vmatmul.mubr.bf16.gmra.mrb[0].mxu0 %v295
      %v839 = vpop.f32.mrb[0].mxu0
      %v840 = vadd.f32 %v382, %v839
      %v841 = vpop.f32.mrb[0].mxu0
      %v842 = vadd.f32 %v386, %v841
      %v843 = vpop.f32.mrb[0].mxu0
      %v844 = vpop.f32.mrb[0].mxu0
      %845 = vdwg.mxu0
      %846 = vmatprep.subr.bf16.mxu0 %v602
      %847 = vmatpush1.bf16.msra.mxu0 %v601
      %848 = vmatprep.subr.bf16.mxu0 %v610
      %849 = vmatpush1.bf16.msra.mxu0 %v609
      %850 = vmatprep.subr.bf16.mxu0 %v618
      %851 = vmatpush1.bf16.msra.mxu0 %v617
      %852 = vmatprep.subr.bf16.mxu0 %v626
      %853 = vmatpush1.bf16.msra.mxu0 %v625
      %854 = vmatprep.subr.bf16.mxu0 %v634
      %855 = vmatpush1.bf16.msra.mxu0 %v633
      %856 = vmatprep.subr.bf16.mxu0 %v642
      %857 = vmatpush1.bf16.msra.mxu0 %v641
      %858 = vmatprep.subr.bf16.mxu0 %v650
      %859 = vmatpush1.bf16.msra.mxu0 %v649
      %860 = vmatprep.subr.bf16.mxu0 %v658
      %861 = vmatpush1.bf16.msra.mxu0 %v657
      %862 = vmatprep.subr.bf16.mxu0 0
      %863 = vmatpush1.bf16.msra.mxu0 0
      %864 = vmatprep.subr.bf16.mxu0 0
      %865 = vmatpush1.bf16.msra.mxu0 0
      %866 = vmatprep.subr.bf16.mxu0 0
      %867 = vmatpush1.bf16.msra.mxu0 0
      %868 = vmatprep.subr.bf16.mxu0 0
      %869 = vmatpush1.bf16.msra.mxu0 0
      %870 = vmatprep.subr.bf16.mxu0 0
      %871 = vmatpush1.bf16.msra.mxu0 0
      %872 = vmatprep.subr.bf16.mxu0 0
      %873 = vmatpush1.bf16.msra.mxu0 0
      %874 = vmatprep.subr.bf16.mxu0 0
      %875 = vmatpush1.bf16.msra.mxu0 0
      %876 = vmatprep.subr.bf16.mxu0 0
      %877 = vmatpush1.bf16.msra.mxu0 0
      %878 = vmatprep.mubr.bf16.mxu0 0
      %879 = vmatmul.mubr.bf16.gmra.mrb[0].mxu0 %v295
      %v880 = vpop.f32.mrb[0].mxu0
      %v881 = vadd.f32 %v390, %v880
      %v882 = vpop.f32.mrb[0].mxu0
      %v883 = vadd.f32 %v394, %v882
      %v884 = vpop.f32.mrb[0].mxu0
      %v885 = vpop.f32.mrb[0].mxu0
      %886 = vdwg.mxu0
      %v895 = vcombine.low %v758, %v760
      %v896 = vcombine.low %v799, %v801
      %v898 = vunpack.c.l.s4 1983009808
      %v899 = vunpack.c.0.s8 %v898
      %v900 = vlaneseq
      %v901 = vshrl.u32 %v900, 7
      %v902 = vsub.s32 %v899, %v901
      %v903 = vrot.slane %v895, %v902
      %v905 = vunpack.c.l.s4 1983009808
      %v906 = vunpack.c.0.s8 %v905
      %v907 = vlaneseq
      %v908 = vshrl.u32 %v907, 7
      %v909 = vsub.s32 %v906, %v908
      %v910 = vrot.slane %v896, %v909
      %v911 = vcombine.low %v903, %v910
      %v912 = vcombine.low %v840, %v842
      %v913 = vcombine.low %v881, %v883
      %v915 = vunpack.c.l.s4 1983009808
      %v916 = vunpack.c.0.s8 %v915
      %v917 = vlaneseq
      %v918 = vshrl.u32 %v917, 7
      %v919 = vsub.s32 %v916, %v918
      %v920 = vrot.slane %v912, %v919
      %v922 = vunpack.c.l.s4 1983009808
      %v923 = vunpack.c.0.s8 %v922
      %v924 = vlaneseq
      %v925 = vshrl.u32 %v924, 7
      %v926 = vsub.s32 %v923, %v925
      %v927 = vrot.slane %v913, %v926
      %v928 = vcombine.low %v920, %v927
      %931 = vst [vmem:[#allocation10] sm:$0xff] %v911
      %932 = vst [vmem:[#allocation10 + $0x8] sm:$0xff] %v928
      %v933 = vld [vmem:[#allocation9] sm:$0xff]
      %v934 = vld [vmem:[#allocation9 + $0x8] sm:$0xff]
      %v935 = vld [vmem:[#allocation9 + $0x10] sm:$0xff]
      %v936 = vld [vmem:[#allocation9 + $0x18] sm:$0xff]
      %v937 = vld [vmem:[#allocation9 + $0x20] sm:$0xff]
      %v938 = vld [vmem:[#allocation9 + $0x28] sm:$0xff]
      %v939 = vld [vmem:[#allocation9 + $0x30] sm:$0xff]
      %v940 = vld [vmem:[#allocation9 + $0x38] sm:$0xff]
      %v941 = vld [vmem:[#allocation9 + $0x40] sm:$0xff]
      %v942 = vld [vmem:[#allocation9 + $0x48] sm:$0xff]
      %v943 = vld [vmem:[#allocation9 + $0x50] sm:$0xff]
      %v944 = vld [vmem:[#allocation9 + $0x58] sm:$0xff]
      %v945 = vld [vmem:[#allocation9 + $0x60] sm:$0xff]
      %v946 = vld [vmem:[#allocation9 + $0x68] sm:$0xff]
      %v947 = vld [vmem:[#allocation9 + $0x70] sm:$0xff]
      %v948 = vld [vmem:[#allocation9 + $0x78] sm:$0xff]
      %v949 = vld [vmem:[#allocation9 + $0x80] sm:$0xff]
      %v950 = vld [vmem:[#allocation9 + $0x88] sm:$0xff]
      %v951 = vld [vmem:[#allocation9 + $0x90] sm:$0xff]
      %v952 = vld [vmem:[#allocation9 + $0x98] sm:$0xff]
      %v953 = vld [vmem:[#allocation9 + $0xa0] sm:$0xff]
      %v954 = vld [vmem:[#allocation9 + $0xa8] sm:$0xff]
      %v955 = vld [vmem:[#allocation9 + $0xb0] sm:$0xff]
      %v956 = vld [vmem:[#allocation9 + $0xb8] sm:$0xff]
      %v957 = vld [vmem:[#allocation9 + $0xc0] sm:$0xff]
      %v958 = vld [vmem:[#allocation9 + $0xc8] sm:$0xff]
      %v959 = vld [vmem:[#allocation9 + $0xd0] sm:$0xff]
      %v960 = vld [vmem:[#allocation9 + $0xd8] sm:$0xff]
      %v961 = vld [vmem:[#allocation9 + $0xe0] sm:$0xff]
      %v962 = vld [vmem:[#allocation9 + $0xe8] sm:$0xff]
      %v963 = vld [vmem:[#allocation9 + $0xf0] sm:$0xff]
      %v964 = vld [vmem:[#allocation9 + $0xf8] sm:$0xff]
      %v965 = vld [vmem:[%s7] sm:$0xf]
      %v967 = vlaneseq
      %v968 = vshrl.u32 %v967, 7
      %v969 = vsub.s32 0, %v968
      %v970 = vrot.slane %v965, %v969
      %v971 = vlaneseq
      %v972 = vshrl.u32 %v971, 7
      %v973 = vsub.s32 1, %v972
      %v974 = vrot.slane %v965, %v973
      %v975 = vlaneseq
      %v976 = vshrl.u32 %v975, 7
      %v977 = vsub.s32 2, %v976
      %v978 = vrot.slane %v965, %v977
      %v979 = vlaneseq
      %v980 = vshrl.u32 %v979, 7
      %v981 = vsub.s32 3, %v980
      %v982 = vrot.slane %v965, %v981
      %v1019 = vunpack.c.l.b16 %v933
      %v1020 = vunpack.c.h.b16 %v933
      %v1021 = vunpack.c.l.b16 %v934
      %v1022 = vunpack.c.h.b16 %v934
      %v1023 = vunpack.c.l.b16 %v935
      %v1024 = vunpack.c.h.b16 %v935
      %v1025 = vunpack.c.l.b16 %v936
      %v1026 = vunpack.c.h.b16 %v936
      %v1027 = vunpack.c.l.b16 %v937
      %v1028 = vunpack.c.h.b16 %v937
      %v1029 = vunpack.c.l.b16 %v938
      %v1030 = vunpack.c.h.b16 %v938
      %v1031 = vunpack.c.l.b16 %v939
      %v1032 = vunpack.c.h.b16 %v939
      %v1033 = vunpack.c.l.b16 %v940
      %v1034 = vunpack.c.h.b16 %v940
      %v1035 = vunpack.c.l.b16 %v941
      %v1036 = vunpack.c.h.b16 %v941
      %v1037 = vunpack.c.l.b16 %v942
      %v1038 = vunpack.c.h.b16 %v942
      %v1039 = vunpack.c.l.b16 %v943
      %v1040 = vunpack.c.h.b16 %v943
      %v1041 = vunpack.c.l.b16 %v944
      %v1042 = vunpack.c.h.b16 %v944
      %v1043 = vunpack.c.l.b16 %v945
      %v1044 = vunpack.c.h.b16 %v945
      %v1045 = vunpack.c.l.b16 %v946
      %v1046 = vunpack.c.h.b16 %v946
      %v1047 = vunpack.c.l.b16 %v947
      %v1048 = vunpack.c.h.b16 %v947
      %v1049 = vunpack.c.l.b16 %v948
      %v1050 = vunpack.c.h.b16 %v948
      %v1051 = vunpack.c.l.b16 %v949
      %v1052 = vunpack.c.h.b16 %v949
      %v1053 = vunpack.c.l.b16 %v950
      %v1054 = vunpack.c.h.b16 %v950
      %v1055 = vunpack.c.l.b16 %v951
      %v1056 = vunpack.c.h.b16 %v951
      %v1057 = vunpack.c.l.b16 %v952
      %v1058 = vunpack.c.h.b16 %v952
      %v1059 = vunpack.c.l.b16 %v953
      %v1060 = vunpack.c.h.b16 %v953
      %v1061 = vunpack.c.l.b16 %v954
      %v1062 = vunpack.c.h.b16 %v954
      %v1063 = vunpack.c.l.b16 %v955
      %v1064 = vunpack.c.h.b16 %v955
      %v1065 = vunpack.c.l.b16 %v956
      %v1066 = vunpack.c.h.b16 %v956
      %v1067 = vunpack.c.l.b16 %v957
      %v1068 = vunpack.c.h.b16 %v957
      %v1069 = vunpack.c.l.b16 %v958
      %v1070 = vunpack.c.h.b16 %v958
      %v1071 = vunpack.c.l.b16 %v959
      %v1072 = vunpack.c.h.b16 %v959
      %v1073 = vunpack.c.l.b16 %v960
      %v1074 = vunpack.c.h.b16 %v960
      %v1075 = vunpack.c.l.b16 %v961
      %v1076 = vunpack.c.h.b16 %v961
      %v1077 = vunpack.c.l.b16 %v962
      %v1078 = vunpack.c.h.b16 %v962
      %v1079 = vunpack.c.l.b16 %v963
      %v1080 = vunpack.c.h.b16 %v963
      %v1081 = vunpack.c.l.b16 %v964
      %v1082 = vunpack.c.h.b16 %v964
      %v1083 = vpack.c.b16 %v1023, %v1019
      %v1084 = vpack.c.b16 %v1024, %v1020
      %v1085 = vpack.c.b16 %v1025, %v1021
      %v1086 = vpack.c.b16 %v1026, %v1022
      %v1087 = vpack.c.b16 %v1031, %v1027
      %v1088 = vpack.c.b16 %v1032, %v1028
      %v1089 = vpack.c.b16 %v1033, %v1029
      %v1090 = vpack.c.b16 %v1034, %v1030
      %v1091 = vpack.c.b16 %v1039, %v1035
      %v1092 = vpack.c.b16 %v1040, %v1036
      %v1093 = vpack.c.b16 %v1041, %v1037
      %v1094 = vpack.c.b16 %v1042, %v1038
      %v1095 = vpack.c.b16 %v1047, %v1043
      %v1096 = vpack.c.b16 %v1048, %v1044
      %v1097 = vpack.c.b16 %v1049, %v1045
      %v1098 = vpack.c.b16 %v1050, %v1046
      %v1099 = vpack.c.b16 %v1055, %v1051
      %v1100 = vpack.c.b16 %v1056, %v1052
      %v1101 = vpack.c.b16 %v1057, %v1053
      %v1102 = vpack.c.b16 %v1058, %v1054
      %v1103 = vpack.c.b16 %v1063, %v1059
      %v1104 = vpack.c.b16 %v1064, %v1060
      %v1105 = vpack.c.b16 %v1065, %v1061
      %v1106 = vpack.c.b16 %v1066, %v1062
      %v1107 = vpack.c.b16 %v1071, %v1067
      %v1108 = vpack.c.b16 %v1072, %v1068
      %v1109 = vpack.c.b16 %v1073, %v1069
      %v1110 = vpack.c.b16 %v1074, %v1070
      %v1111 = vpack.c.b16 %v1079, %v1075
      %v1112 = vpack.c.b16 %v1080, %v1076
      %v1113 = vpack.c.b16 %v1081, %v1077
      %v1114 = vpack.c.b16 %v1082, %v1078
      %1147 = vmatprep.subr.bf16.mxu0 %v1084
      %1148 = vmatpush1.bf16.msra.mxu0 %v1083
      %1149 = vmatprep.subr.bf16.mxu0 %v1088
      %1150 = vmatpush1.bf16.msra.mxu0 %v1087
      %1151 = vmatprep.subr.bf16.mxu0 %v1092
      %1152 = vmatpush1.bf16.msra.mxu0 %v1091
      %1153 = vmatprep.subr.bf16.mxu0 %v1096
      %1154 = vmatpush1.bf16.msra.mxu0 %v1095
      %1155 = vmatprep.subr.bf16.mxu0 %v1100
      %1156 = vmatpush1.bf16.msra.mxu0 %v1099
      %1157 = vmatprep.subr.bf16.mxu0 %v1104
      %1158 = vmatpush1.bf16.msra.mxu0 %v1103
      %1159 = vmatprep.subr.bf16.mxu0 %v1108
      %1160 = vmatpush1.bf16.msra.mxu0 %v1107
      %1161 = vmatprep.subr.bf16.mxu0 %v1112
      %1162 = vmatpush1.bf16.msra.mxu0 %v1111
      %1163 = vmatprep.subr.bf16.mxu0 0
      %1164 = vmatpush1.bf16.msra.mxu0 0
      %1165 = vmatprep.subr.bf16.mxu0 0
      %1166 = vmatpush1.bf16.msra.mxu0 0
      %1167 = vmatprep.subr.bf16.mxu0 0
      %1168 = vmatpush1.bf16.msra.mxu0 0
      %1169 = vmatprep.subr.bf16.mxu0 0
      %1170 = vmatpush1.bf16.msra.mxu0 0
      %1171 = vmatprep.subr.bf16.mxu0 0
      %1172 = vmatpush1.bf16.msra.mxu0 0
      %1173 = vmatprep.subr.bf16.mxu0 0
      %1174 = vmatpush1.bf16.msra.mxu0 0
      %1175 = vmatprep.subr.bf16.mxu0 0
      %1176 = vmatpush1.bf16.msra.mxu0 0
      %1177 = vmatprep.subr.bf16.mxu0 0
      %1178 = vmatpush1.bf16.msra.mxu0 0
      %1179 = vmatprep.mubr.bf16.mxu0 0
      %1180 = vmatmul.mubr.bf16.gmra.mrb[0].mxu0 %v296
      %v1181 = vpop.f32.mrb[0].mxu0
      %v1182 = vadd.f32 %v970, %v1181
      %v1183 = vpop.f32.mrb[0].mxu0
      %v1184 = vadd.f32 %v974, %v1183
      %v1185 = vpop.f32.mrb[0].mxu0
      %v1186 = vpop.f32.mrb[0].mxu0
      %1187 = vdwg.mxu0
      %1188 = vmatprep.subr.bf16.mxu0 %v1086
      %1189 = vmatpush1.bf16.msra.mxu0 %v1085
      %1190 = vmatprep.subr.bf16.mxu0 %v1090
      %1191 = vmatpush1.bf16.msra.mxu0 %v1089
      %1192 = vmatprep.subr.bf16.mxu0 %v1094
      %1193 = vmatpush1.bf16.msra.mxu0 %v1093
      %1194 = vmatprep.subr.bf16.mxu0 %v1098
      %1195 = vmatpush1.bf16.msra.mxu0 %v1097
      %1196 = vmatprep.subr.bf16.mxu0 %v1102
      %1197 = vmatpush1.bf16.msra.mxu0 %v1101
      %1198 = vmatprep.subr.bf16.mxu0 %v1106
      %1199 = vmatpush1.bf16.msra.mxu0 %v1105
      %1200 = vmatprep.subr.bf16.mxu0 %v1110
      %1201 = vmatpush1.bf16.msra.mxu0 %v1109
      %1202 = vmatprep.subr.bf16.mxu0 %v1114
      %1203 = vmatpush1.bf16.msra.mxu0 %v1113
      %1204 = vmatprep.subr.bf16.mxu0 0
      %1205 = vmatpush1.bf16.msra.mxu0 0
      %1206 = vmatprep.subr.bf16.mxu0 0
      %1207 = vmatpush1.bf16.msra.mxu0 0
      %1208 = vmatprep.subr.bf16.mxu0 0
      %1209 = vmatpush1.bf16.msra.mxu0 0
      %1210 = vmatprep.subr.bf16.mxu0 0
      %1211 = vmatpush1.bf16.msra.mxu0 0
      %1212 = vmatprep.subr.bf16.mxu0 0
      %1213 = vmatpush1.bf16.msra.mxu0 0
      %1214 = vmatprep.subr.bf16.mxu0 0
      %1215 = vmatpush1.bf16.msra.mxu0 0
      %1216 = vmatprep.subr.bf16.mxu0 0
      %1217 = vmatpush1.bf16.msra.mxu0 0
      %1218 = vmatprep.subr.bf16.mxu0 0
      %1219 = vmatpush1.bf16.msra.mxu0 0
      %1220 = vmatprep.mubr.bf16.mxu0 0
      %1221 = vmatmul.mubr.bf16.gmra.mrb[0].mxu0 %v296
      %v1222 = vpop.f32.mrb[0].mxu0
      %v1223 = vadd.f32 %v978, %v1222
      %v1224 = vpop.f32.mrb[0].mxu0
      %v1225 = vadd.f32 %v982, %v1224
      %v1226 = vpop.f32.mrb[0].mxu0
      %v1227 = vpop.f32.mrb[0].mxu0
      %1228 = vdwg.mxu0
      %v1233 = vcombine.low %v1182, %v1184
      %v1234 = vcombine.low %v1223, %v1225
      %v1236 = vunpack.c.l.s4 1983009808
      %v1237 = vunpack.c.0.s8 %v1236
      %v1238 = vlaneseq
      %v1239 = vshrl.u32 %v1238, 7
      %v1240 = vsub.s32 %v1237, %v1239
      %v1241 = vrot.slane %v1233, %v1240
      %v1243 = vunpack.c.l.s4 1983009808
      %v1244 = vunpack.c.0.s8 %v1243
      %v1245 = vlaneseq
      %v1246 = vshrl.u32 %v1245, 7
      %v1247 = vsub.s32 %v1244, %v1246
      %v1248 = vrot.slane %v1234, %v1247
      %v1249 = vcombine.low %v1241, %v1248
      %1251 = vst [vmem:[#allocation11] sm:$0xff] %v1249
      %v1252 = vld [vmem:[%s8] sm:$0x1]
      %v1254 = vlaneseq
      %v1255 = vshrl.u32 %v1254, 7
      %v1256 = vsub.s32 0, %v1255
      %v1257 = vrot.slane %v1252, %v1256
      %v1259 = vrot.slane %v283, 4
      %v1261 = vmul.f32 %v1259, %v1257
      %vm1262 = vcmask 1041408
      %v1263 = vsel %vm1262, %v1261, 0.0
      %1264 = vadd.xlane.f32.xlu0 %v1263
      %v1265 = vpop.xlane.xlu0 %1264
      %v1266 = vld [vmem:[#allocation3] sm:$0x1]
      %v1268 = vlaneseq
      %v1269 = vshrl.u32 %v1268, 7
      %v1270 = vsub.s32 0, %v1269
      %v1271 = vrot.slane %v1266, %v1270
      %v1273 = vadd.f32 %v1265, %v1271
      %v1274 = vxor.u32 %v1273, 2147483648
      %v1275 = vmul.f32 %v1274, 1.442695
      %v1276 = vpow.pop %v1275
      %v1277 = vadd.f32 %v1276, 1.0
      %v1278 = vrcp.pop %v1277
      %v1279 = vmul.f32 1.0, %v1278
      %vm1280 = vcmask 1024
      %1281 = vst.msk [vmem:[%s12] sm:$0x3] %vm1280, %v1279
    $region61: #{medical_lfm_heads.3} parent=1 // pred_fallthru
      _
    // Predicated region
    $region62: #{medical_lfm_heads.3} parent=1 // pred_check
      _
    $region63: #{medical_lfm_heads.3} parent=1 // pred_check_branch
      %1283 = sbr.rel (0) target = $region65
    $region64: #{medical_lfm_heads.3} parent=1 // pred_region
      %s1285 = ssub.s32 256, 256
      %1286 = vsyncadd [#allocation6], %s1285
      %s1288 = sshll.u32 [#allocation10], 4
      %s1289 = int_to_ptr.vmem [resolvable:$true] %s1288
      %1291 = dma.vmem_to_hbm [thread:$0]  %s1289, 256, %s10, [#allocation6]
    $region65: #{medical_lfm_heads.3} parent=1 // pred_fallthru
      _
    // Predicated region
    $region66: #{medical_lfm_heads.3} parent=1 // pred_check
      _
    $region67: #{medical_lfm_heads.3} parent=1 // pred_check_branch
      %1293 = sbr.rel (0) target = $region69
    $region68: #{medical_lfm_heads.3} parent=1 // pred_region
      %s1295 = ssub.s32 128, 128
      %1296 = vsyncadd [#allocation12], %s1295
      %s1298 = sshll.u32 [#allocation11], 4
      %s1299 = int_to_ptr.vmem [resolvable:$true] %s1298
      %1301 = dma.vmem_to_hbm [thread:$0]  %s1299, 128, %s11, [#allocation12]
    $region69: #{medical_lfm_heads.3} parent=1 // pred_fallthru
      _
    // Predicated region
    $region70: #{medical_lfm_heads.3} parent=1 // pred_check
      _
    $region71: #{medical_lfm_heads.3} parent=1 // pred_check_branch
      %1303 = sbr.rel (0) target = $region73
    $region72: #{medical_lfm_heads.3} parent=1 // pred_region
      _
    $region73: #{medical_lfm_heads.3} parent=1 // pred_fallthru
      _
    // Predicated region
    $region74: #{medical_lfm_heads.3} parent=1 // pred_check
      _
    $region75: #{medical_lfm_heads.3} parent=1 // pred_check_branch
      %1305 = sbr.rel (0) target = $region77
    $region76: #{medical_lfm_heads.3} parent=1 // pred_region
      %1306 = dma.done [#allocation6], 256
    $region77: #{medical_lfm_heads.3} parent=1 // pred_fallthru
      _
    // Predicated region
    $region78: #{medical_lfm_heads.3} parent=1 // pred_check
      _
    $region79: #{medical_lfm_heads.3} parent=1 // pred_check_branch
      %1308 = sbr.rel (0) target = $region81
    $region80: #{medical_lfm_heads.3} parent=1 // pred_region
      %1309 = dma.done [#allocation12], 128
    $region81: #{medical_lfm_heads.3} parent=1 // pred_fallthru
      _
    // Predicated region
    $region82: #{medical_lfm_heads.3} parent=1 // pred_check
      _
    $region83: #{medical_lfm_heads.3} parent=1 // pred_check_branch
      %1311 = sbr.rel (0) target = $region85
    $region84: #{medical_lfm_heads.3} parent=1 // pred_region
      _
    $region85: #{medical_lfm_heads.3} parent=1 // pred_fallthru
      _
    %1312 = vsyncpa [#allocation5], 1
    %1313 = vsyncpa [#allocation8], 1
    %1314 = vsyncpa [#allocation6], 1
    %1315 = vsyncpa [#allocation12], 1

</llo_original>
